<compile_context>
chip_gen: v7x
topology: tpu7x:2x2x1
jax: 0.10.0
libtpu: 0.0.40
codegen_flags: <defaults>
</compile_context>

<pallas_src>
import jax
import jax.numpy as jnp
from jax.experimental import pallas as pl
from jax.experimental.pallas import tpu as pltpu

IN_DIM, HIDDEN_DIM, OUT_DIM = 4, 2, 1
_LANE = 128
_GROUPS = _LANE // IN_DIM          # 32 batch elements per 128-lane row


def mlp_kernel(x_ref, m0_ref, b0_ref, m1_ref, b1_ref, o_ref):
    """x_ref: [TR, 128] f32 tile of the flat (feature-interleaved) input.

    m0_ref: [128, 128] block-diag de-interleave + layer-0 weights (VMEM).
    b0_ref: [1, 128]   layer-0 bias lane pattern (VMEM).
    m1_ref: [128, 32]  layer-1 weights + lane compaction (VMEM).
    b1_ref: (1,)       layer-1 bias scalar (SMEM).
    o_ref : [TR, 32]   batch-ordered output tile.
    """
    x = x_ref[...]                                               # [TR, 128]
    h = jnp.dot(x, m0_ref[...],
                precision=jax.lax.Precision.HIGHEST,
                preferred_element_type=jnp.float32)              # [TR, 128]
    h = jnp.maximum(h + b0_ref[...], 0.0)                        # bias + ReLU
    y = jnp.dot(h, m1_ref[...],
                precision=jax.lax.Precision.HIGHEST,
                preferred_element_type=jnp.float32)              # [TR, 32]
    o_ref[...] = (y + b1_ref[0]).astype(o_ref.dtype)


def _choose_tile(r_total, tr_max=8192, tr_min=1024):
    """Pick a sublane-row tile size (multiple of 8) and grid length.

    tr_max=8192 rows -> 4 MiB input + 1 MiB output per step (double-buffered
    ~10 MiB, safe on v7x's 64 MiB VMEM).  For large inputs we force >= 2 grid
    steps so both v7x TensorCores get work.
    """
    if r_total <= tr_min:
        return r_total, 1
    n = max(2, pl.cdiv(r_total, tr_max))
    tr = pl.cdiv(r_total, n)
    tr = -(-tr // 8) * 8                       # sublane multiple for the block
    return tr, pl.cdiv(r_total, tr)


def mlp_forward(x, w0, b0, w1, b1):
    """x: [B, 4] f32. w0: [4, 2], b0: [2], w1: [2, 1], b1: [1]. Returns [B, 1]."""
    B = x.shape[0]
    dt = jnp.float32
    G = _GROUPS

    bp = pl.cdiv(B, G) * G
    if bp != B:
        # TODO(synk): only hit when B % 32 != 0; full-copy pad of <=31 rows.
        x = jnp.pad(x, ((0, bp - B), (0, 0)))
    R = bp // G
    x_flat = x.reshape(R, _LANE)               # free row-major reshape (bitcast)

    # Tiny constant matrices: de-interleave + weights fused for the MXU.
    #   m0[g*4+f, g*4+j] = w0[f, j]   (j < 2, zero otherwise)
    #   m1[g*4+j, g]     = w1[j, 0]   (j < 2, zero otherwise)
    w0p = jnp.zeros((IN_DIM, IN_DIM), dt).at[:, :HIDDEN_DIM].set(w0.astype(dt))
    m0 = jnp.kron(jnp.eye(G, dtype=dt), w0p)                       # [128, 128]
    b0p = jnp.tile(
        jnp.concatenate([b0.astype(dt),
                         jnp.zeros((IN_DIM - HIDDEN_DIM,), dt)]), G)[None, :]
    w1p = jnp.zeros((IN_DIM, OUT_DIM), dt).at[:HIDDEN_DIM, :].set(w1.astype(dt))
    m1 = jnp.kron(jnp.eye(G, dtype=dt), w1p)                       # [128, 32]

    tr, n_tiles = _choose_tile(R)

    out = pl.pallas_call(
        mlp_kernel,
        out_shape=jax.ShapeDtypeStruct((R, G), dt),
        grid=(n_tiles,),
        in_specs=[
            pl.BlockSpec((tr, _LANE), lambda i: (i, 0)),            # x tile
            pl.BlockSpec((_LANE, _LANE), lambda i: (0, 0)),         # m0 (resident)
            pl.BlockSpec((1, _LANE), lambda i: (0, 0)),             # b0 pattern
            pl.BlockSpec((_LANE, G), lambda i: (0, 0)),             # m1 (resident)
            pl.BlockSpec(memory_space=pltpu.MemorySpace.SMEM),      # b1 scalar
        ],
        out_specs=pl.BlockSpec((tr, G), lambda i: (i, 0)),
        compiler_params=pltpu.CompilerParams(
            dimension_semantics=("parallel",),
            vmem_limit_bytes=48 * 1024 * 1024),
        cost_estimate=pl.CostEstimate(
            flops=2 * B * (IN_DIM * HIDDEN_DIM + HIDDEN_DIM * OUT_DIM),
            transcendentals=0,
            bytes_accessed=4 * B * (IN_DIM + OUT_DIM)),
    )(x_flat, m0, b0p, m1, b1)

    # [R, 32] row-major flat order IS batch order -> free reshape to [B, 1].
    return out.reshape(bp, OUT_DIM)[:B]


def init_params(key):
    # Mimic PyTorch nn.Linear default init: U(-1/sqrt(fan_in), +1/sqrt(fan_in)).
    k0w, k0b, k1w, k1b = jax.random.split(key, 4)
    bound0 = 1.0 / jnp.sqrt(4.0)
    bound1 = 1.0 / jnp.sqrt(2.0)
    w0 = jax.random.uniform(k0w, (IN_DIM, HIDDEN_DIM), jnp.float32, -bound0, bound0)
    b0 = jax.random.uniform(k0b, (HIDDEN_DIM,), jnp.float32, -bound0, bound0)
    w1 = jax.random.uniform(k1w, (HIDDEN_DIM, OUT_DIM), jnp.float32, -bound1, bound1)
    b1 = jax.random.uniform(k1b, (OUT_DIM,), jnp.float32, -bound1, bound1)
    return w0, b0, w1, b1


if __name__ == "__main__":
    import numpy as np

    key = jax.random.PRNGKey(0)
    kx, kp = jax.random.split(key)
    B = 256                                   # small, multiple of 32 -> zero-copy path
    x = jax.random.normal(kx, (B, IN_DIM), jnp.float32)
    w0, b0, w1, b1 = init_params(kp)

    fwd = jax.jit(mlp_forward)
    out = jax.block_until_ready(fwd(x, w0, b0, w1, b1))

    # Exact f32 reference on host (same math as the PyTorch forward).
    xn, w0n, b0n, w1n, b1n = map(np.asarray, (x, w0, b0, w1, b1))
    ref = np.maximum(xn @ w0n + b0n, 0.0) @ w1n + b1n

    assert out.shape == (B, OUT_DIM)
    assert np.allclose(np.asarray(out), ref, atol=1e-5, rtol=1e-5)
    print("KERNEL_OK")
</pallas_src>

<mosaic_0001>
module attributes {stable_mosaic.version = 11 : i64} {
  func.func @mlp_kernel(%arg0: i32, %arg1: memref<8x128xf32, #tpu.memory_space<vmem>>, %arg2: memref<128x128xf32, #tpu.memory_space<vmem>>, %arg3: memref<1x128xf32, #tpu.memory_space<vmem>>, %arg4: memref<128x32xf32, #tpu.memory_space<vmem>>, %arg5: memref<1xf32, #tpu.memory_space<smem>>, %arg6: memref<8x32xf32, #tpu.memory_space<vmem>>) attributes {dimension_semantics = [#tpu.dimension_semantics<parallel>], iteration_bounds = array<i64: 1>, scalar_prefetch = 0 : i64, scratch_operands = 0 : i64, tpu.core_type = #tpu.core_type<tc>, window_params = [{transform_indices = @transform_0, window_bounds = array<i64: 8, 128>}, {pipeline_mode = #tpu.pipeline_mode<synchronous>, transform_indices = @transform_1, window_bounds = array<i64: 128, 128>}, {pipeline_mode = #tpu.pipeline_mode<synchronous>, transform_indices = @transform_2, window_bounds = array<i64: 1, 128>}, {pipeline_mode = #tpu.pipeline_mode<synchronous>, transform_indices = @transform_3, window_bounds = array<i64: 128, 32>}, {transform_indices = @transform_4, window_bounds = array<i64: 1>}, {transform_indices = @transform_5, window_bounds = array<i64: 8, 32>}]} {
    %c0 = arith.constant 0 : index
    %c0_0 = arith.constant 0 : index
    %0 = vector.load %arg1[%c0, %c0_0] : memref<8x128xf32, #tpu.memory_space<vmem>>, vector<8x128xf32>
    %c0_1 = arith.constant 0 : index
    %c0_2 = arith.constant 0 : index
    %1 = vector.load %arg2[%c0_1, %c0_2] : memref<128x128xf32, #tpu.memory_space<vmem>>, vector<128x128xf32>
    %cst = arith.constant dense<0.000000e+00> : vector<8x128xf32>
    %2 = tpu.matmul %0, %1, %cst {dimension_numbers = #tpu.dot_dimension_numbers<[1], [0], [0], [1], [0, 0, 1, 1], [], []>, precision = #tpu.contract_precision<fp32>} : vector<8x128xf32>, vector<128x128xf32>, vector<8x128xf32> -> vector<8x128xf32>
    %c0_3 = arith.constant 0 : index
    %c0_4 = arith.constant 0 : index
    %3 = vector.load %arg3[%c0_3, %c0_4] : memref<1x128xf32, #tpu.memory_space<vmem>>, vector<1x128xf32>
    %4 = vector.broadcast %3 : vector<1x128xf32> to vector<8x128xf32>
    %5 = arith.addf %2, %4 : vector<8x128xf32>
    %cst_5 = arith.constant 0.000000e+00 : f32
    %6 = vector.broadcast %cst_5 : f32 to vector<8x128xf32>
    %7 = arith.maximumf %5, %6 : vector<8x128xf32>
    %c0_6 = arith.constant 0 : index
    %c0_7 = arith.constant 0 : index
    %8 = vector.load %arg4[%c0_6, %c0_7] : memref<128x32xf32, #tpu.memory_space<vmem>>, vector<128x32xf32>
    %cst_8 = arith.constant dense<0.000000e+00> : vector<8x32xf32>
    %9 = tpu.matmul %7, %8, %cst_8 {dimension_numbers = #tpu.dot_dimension_numbers<[1], [0], [0], [1], [0, 0, 1, 1], [], []>, precision = #tpu.contract_precision<fp32>} : vector<8x128xf32>, vector<128x32xf32>, vector<8x32xf32> -> vector<8x32xf32>
    %c0_9 = arith.constant 0 : index
    %10 = memref.load %arg5[%c0_9] : memref<1xf32, #tpu.memory_space<smem>>
    %11 = vector.broadcast %10 : f32 to vector<8x32xf32>
    %12 = arith.addf %9, %11 : vector<8x32xf32>
    %c0_10 = arith.constant 0 : index
    %c0_11 = arith.constant 0 : index
    %13 = vector.load %arg6[%c0_10, %c0_11] : memref<8x32xf32, #tpu.memory_space<vmem>>, vector<8x32xf32>
    tpu.vector_store %arg6[%c0_10, %c0_11], %12 {strides = array<i32>} : memref<8x32xf32, #tpu.memory_space<vmem>>, vector<8x32xf32>,
    return
  }
  func.func @transform_0(%arg0: i32) -> (i32, i32) {
    %c0_i32 = arith.constant 0 : i32
    %c0_i32_0 = arith.constant 0 : i32
    return %arg0, %c0_i32 : i32, i32
  }
  func.func @transform_1(%arg0: i32) -> (i32, i32) {
    %c0_i32 = arith.constant 0 : i32
    %c0_i32_0 = arith.constant 0 : i32
    %c0_i32_1 = arith.constant 0 : i32
    return %c0_i32, %c0_i32_0 : i32, i32
  }
  func.func @transform_2(%arg0: i32) -> (i32, i32) {
    %c0_i32 = arith.constant 0 : i32
    %c0_i32_0 = arith.constant 0 : i32
    %c0_i32_1 = arith.constant 0 : i32
    return %c0_i32, %c0_i32_0 : i32, i32
  }
  func.func @transform_3(%arg0: i32) -> (i32, i32) {
    %c0_i32 = arith.constant 0 : i32
    %c0_i32_0 = arith.constant 0 : i32
    %c0_i32_1 = arith.constant 0 : i32
    return %c0_i32, %c0_i32_0 : i32, i32
  }
  func.func @transform_4(%arg0: i32) -> i32 {
    %c0_i32 = arith.constant 0 : i32
    %c0_i32_0 = arith.constant 0 : i32
    return %c0_i32 : i32
  }
  func.func @transform_5(%arg0: i32) -> (i32, i32) {
    %c0_i32 = arith.constant 0 : i32
    %c0_i32_0 = arith.constant 0 : i32
    return %arg0, %c0_i32 : i32, i32
  }
}

</mosaic_0001>

<llo_original>
// kernel: tile.9
$region0: #{tile.9}
  %s0 = inlined_call_operand.vmem [shape: f32[32,4], index: 0, kind: input, shape index: {}]
  %s1 = inlined_call_operand.vmem [shape: f32[1,128], index: 1, kind: output, shape index: {}]
  $region1: #{tile.9} parent=0
    #allocation0 [shape = 'u8[4096]{0}', space=vmem, size = 0x1000, scoped, tag = 'scoped mem for output reshape']
    %v2 = vld [vmem:[%s0] sm:$0x1]
    %vm3 = vcmask 31744
    %4 = vst.msk [vmem:[#allocation0] sm:$0x1] %vm3, %v2
    %s5 = scalar_lea.vmem %s0, 31
    %v6 = vld [vmem:[%s5] sm:$0x1]
    %7 = vrot.lane.b32.xlu0 %v6, 124
    %v8 = vpop.permute.xlu0 %7
    %vm9 = vcmask 1048544
    %10 = vst.msk [vmem:[#allocation0] sm:$0x1] %vm9, %v8
    %s11 = scalar_lea.vmem %s0, 30
    %v12 = vld [vmem:[%s11] sm:$0x1]
    %13 = vrot.lane.b32.xlu0 %v12, 120
    %v14 = vpop.permute.xlu0 %13
    %vm15 = vcmask 1015744
    %16 = vst.msk [vmem:[#allocation0] sm:$0x1] %vm15, %v14
    %s17 = scalar_lea.vmem %s0, 29
    %v18 = vld [vmem:[%s17] sm:$0x1]
    %19 = vrot.lane.b32.xlu0 %v18, 116
    %v20 = vpop.permute.xlu0 %19
    %vm21 = vcmask 982944
    %22 = vst.msk [vmem:[#allocation0] sm:$0x1] %vm21, %v20
    %s23 = scalar_lea.vmem %s0, 28
    %v24 = vld [vmem:[%s23] sm:$0x1]
    %25 = vrot.lane.b32.xlu0 %v24, 112
    %v26 = vpop.permute.xlu0 %25
    %vm27 = vcmask 950144
    %28 = vst.msk [vmem:[#allocation0] sm:$0x1] %vm27, %v26
    %s29 = scalar_lea.vmem %s0, 27
    %v30 = vld [vmem:[%s29] sm:$0x1]
    %31 = vrot.lane.b32.xlu0 %v30, 108
    %v32 = vpop.permute.xlu0 %31
    %vm33 = vcmask 917344
    %34 = vst.msk [vmem:[#allocation0] sm:$0x1] %vm33, %v32
    %s35 = scalar_lea.vmem %s0, 26
    %v36 = vld [vmem:[%s35] sm:$0x1]
    %37 = vrot.lane.b32.xlu0 %v36, 104
    %v38 = vpop.permute.xlu0 %37
    %vm39 = vcmask 884544
    %40 = vst.msk [vmem:[#allocation0] sm:$0x1] %vm39, %v38
    %s41 = scalar_lea.vmem %s0, 25
    %v42 = vld [vmem:[%s41] sm:$0x1]
    %43 = vrot.lane.b32.xlu0 %v42, 100
    %v44 = vpop.permute.xlu0 %43
    %vm45 = vcmask 851744
    %46 = vst.msk [vmem:[#allocation0] sm:$0x1] %vm45, %v44
    %s47 = scalar_lea.vmem %s0, 24
    %v48 = vld [vmem:[%s47] sm:$0x1]
    %49 = vrot.lane.b32.xlu0 %v48, 96
    %v50 = vpop.permute.xlu0 %49
    %vm51 = vcmask 818944
    %52 = vst.msk [vmem:[#allocation0] sm:$0x1] %vm51, %v50
    %s53 = scalar_lea.vmem %s0, 23
    %v54 = vld [vmem:[%s53] sm:$0x1]
    %55 = vrot.lane.b32.xlu0 %v54, 92
    %v56 = vpop.permute.xlu0 %55
    %vm57 = vcmask 786144
    %58 = vst.msk [vmem:[#allocation0] sm:$0x1] %vm57, %v56
    %s59 = scalar_lea.vmem %s0, 22
    %v60 = vld [vmem:[%s59] sm:$0x1]
    %61 = vrot.lane.b32.xlu0 %v60, 88
    %v62 = vpop.permute.xlu0 %61
    %vm63 = vcmask 753344
    %64 = vst.msk [vmem:[#allocation0] sm:$0x1] %vm63, %v62
    %s65 = scalar_lea.vmem %s0, 21
    %v66 = vld [vmem:[%s65] sm:$0x1]
    %67 = vrot.lane.b32.xlu0 %v66, 84
    %v68 = vpop.permute.xlu0 %67
    %vm69 = vcmask 720544
    %70 = vst.msk [vmem:[#allocation0] sm:$0x1] %vm69, %v68
    %s71 = scalar_lea.vmem %s0, 20
    %v72 = vld [vmem:[%s71] sm:$0x1]
    %73 = vrot.lane.b32.xlu0 %v72, 80
    %v74 = vpop.permute.xlu0 %73
    %vm75 = vcmask 687744
    %76 = vst.msk [vmem:[#allocation0] sm:$0x1] %vm75, %v74
    %s77 = scalar_lea.vmem %s0, 19
    %v78 = vld [vmem:[%s77] sm:$0x1]
    %79 = vrot.lane.b32.xlu0 %v78, 76
    %v80 = vpop.permute.xlu0 %79
    %vm81 = vcmask 654944
    %82 = vst.msk [vmem:[#allocation0] sm:$0x1] %vm81, %v80
    %s83 = scalar_lea.vmem %s0, 18
    %v84 = vld [vmem:[%s83] sm:$0x1]
    %85 = vrot.lane.b32.xlu0 %v84, 72
    %v86 = vpop.permute.xlu0 %85
    %vm87 = vcmask 622144
    %88 = vst.msk [vmem:[#allocation0] sm:$0x1] %vm87, %v86
    %s89 = scalar_lea.vmem %s0, 17
    %v90 = vld [vmem:[%s89] sm:$0x1]
    %91 = vrot.lane.b32.xlu0 %v90, 68
    %v92 = vpop.permute.xlu0 %91
    %vm93 = vcmask 589344
    %94 = vst.msk [vmem:[#allocation0] sm:$0x1] %vm93, %v92
    %s95 = scalar_lea.vmem %s0, 16
    %v96 = vld [vmem:[%s95] sm:$0x1]
    %97 = vrot.lane.b32.xlu0 %v96, 64
    %v98 = vpop.permute.xlu0 %97
    %vm99 = vcmask 556544
    %100 = vst.msk [vmem:[#allocation0] sm:$0x1] %vm99, %v98
    %s101 = scalar_lea.vmem %s0, 15
    %v102 = vld [vmem:[%s101] sm:$0x1]
    %103 = vrot.lane.b32.xlu0 %v102, 60
    %v104 = vpop.permute.xlu0 %103
    %vm105 = vcmask 523744
    %106 = vst.msk [vmem:[#allocation0] sm:$0x1] %vm105, %v104
    %s107 = scalar_lea.vmem %s0, 14
    %v108 = vld [vmem:[%s107] sm:$0x1]
    %109 = vrot.lane.b32.xlu0 %v108, 56
    %v110 = vpop.permute.xlu0 %109
    %vm111 = vcmask 490944
    %112 = vst.msk [vmem:[#allocation0] sm:$0x1] %vm111, %v110
    %s113 = scalar_lea.vmem %s0, 13
    %v114 = vld [vmem:[%s113] sm:$0x1]
    %115 = vrot.lane.b32.xlu0 %v114, 52
    %v116 = vpop.permute.xlu0 %115
    %vm117 = vcmask 458144
    %118 = vst.msk [vmem:[#allocation0] sm:$0x1] %vm117, %v116
    %s119 = scalar_lea.vmem %s0, 12
    %v120 = vld [vmem:[%s119] sm:$0x1]
    %121 = vrot.lane.b32.xlu0 %v120, 48
    %v122 = vpop.permute.xlu0 %121
    %vm123 = vcmask 425344
    %124 = vst.msk [vmem:[#allocation0] sm:$0x1] %vm123, %v122
    %s125 = scalar_lea.vmem %s0, 11
    %v126 = vld [vmem:[%s125] sm:$0x1]
    %127 = vrot.lane.b32.xlu0 %v126, 44
    %v128 = vpop.permute.xlu0 %127
    %vm129 = vcmask 392544
    %130 = vst.msk [vmem:[#allocation0] sm:$0x1] %vm129, %v128
    %s131 = scalar_lea.vmem %s0, 10
    %v132 = vld [vmem:[%s131] sm:$0x1]
    %133 = vrot.lane.b32.xlu0 %v132, 40
    %v134 = vpop.permute.xlu0 %133
    %vm135 = vcmask 359744
    %136 = vst.msk [vmem:[#allocation0] sm:$0x1] %vm135, %v134
    %s137 = scalar_lea.vmem %s0, 9
    %v138 = vld [vmem:[%s137] sm:$0x1]
    %139 = vrot.lane.b32.xlu0 %v138, 36
    %v140 = vpop.permute.xlu0 %139
    %vm141 = vcmask 326944
    %142 = vst.msk [vmem:[#allocation0] sm:$0x1] %vm141, %v140
    %s143 = scalar_lea.vmem %s0, 8
    %v144 = vld [vmem:[%s143] sm:$0x1]
    %145 = vrot.lane.b32.xlu0 %v144, 32
    %v146 = vpop.permute.xlu0 %145
    %vm147 = vcmask 294144
    %148 = vst.msk [vmem:[#allocation0] sm:$0x1] %vm147, %v146
    %s149 = scalar_lea.vmem %s0, 7
    %v150 = vld [vmem:[%s149] sm:$0x1]
    %151 = vrot.lane.b32.xlu0 %v150, 28
    %v152 = vpop.permute.xlu0 %151
    %vm153 = vcmask 261344
    %154 = vst.msk [vmem:[#allocation0] sm:$0x1] %vm153, %v152
    %s155 = scalar_lea.vmem %s0, 6
    %v156 = vld [vmem:[%s155] sm:$0x1]
    %157 = vrot.lane.b32.xlu0 %v156, 24
    %v158 = vpop.permute.xlu0 %157
    %vm159 = vcmask 228544
    %160 = vst.msk [vmem:[#allocation0] sm:$0x1] %vm159, %v158
    %s161 = scalar_lea.vmem %s0, 5
    %v162 = vld [vmem:[%s161] sm:$0x1]
    %163 = vrot.lane.b32.xlu0 %v162, 20
    %v164 = vpop.permute.xlu0 %163
    %vm165 = vcmask 195744
    %166 = vst.msk [vmem:[#allocation0] sm:$0x1] %vm165, %v164
    %s167 = scalar_lea.vmem %s0, 4
    %v168 = vld [vmem:[%s167] sm:$0x1]
    %169 = vrot.lane.b32.xlu0 %v168, 16
    %v170 = vpop.permute.xlu0 %169
    %vm171 = vcmask 162944
    %172 = vst.msk [vmem:[#allocation0] sm:$0x1] %vm171, %v170
    %s173 = scalar_lea.vmem %s0, 3
    %v174 = vld [vmem:[%s173] sm:$0x1]
    %175 = vrot.lane.b32.xlu0 %v174, 12
    %v176 = vpop.permute.xlu0 %175
    %vm177 = vcmask 130144
    %178 = vst.msk [vmem:[#allocation0] sm:$0x1] %vm177, %v176
    %s179 = scalar_lea.vmem %s0, 2
    %v180 = vld [vmem:[%s179] sm:$0x1]
    %181 = vrot.lane.b32.xlu0 %v180, 8
    %v182 = vpop.permute.xlu0 %181
    %vm183 = vcmask 97344
    %184 = vst.msk [vmem:[#allocation0] sm:$0x1] %vm183, %v182
    %s185 = scalar_lea.vmem %s0, 1
    %v186 = vld [vmem:[%s185] sm:$0x1]
    %187 = vrot.lane.b32.xlu0 %v186, 4
    %v188 = vpop.permute.xlu0 %187
    %vm189 = vcmask 64544
    %190 = vst.msk [vmem:[#allocation0] sm:$0x1] %vm189, %v188
    %s192 = sshllo.u32 0, 1
    %v194 = vld [vmem:[#allocation0] sm:%s192]
    %s195 = sshllo.u32 0, 1
    %196 = vst [vmem:[%s1] sm:%s195] %v194

// kernel: mlp_forward.1
$region0: #{mlp_forward.1}
  #allocation0 [shape = 'u32[]', space=smem, size = 0x4, offset = 0x4, fixed_abs, tag = 'smem constant byte address 0x4 - core index']
  #allocation1 [shape = 'u32[144,128]{1,0:T(1,128)}', space=vmem, size = 0x12000, scoped, tag = 'internal scratch']
  #allocation2 [shape = 'f32[1]{0:T(128)S(6)}', space=smem, size = 0x200, scoped, tag = 'scoped memory for mlp_forward.1']
  %s0 = inlined_call_operand.vmem [shape: f32[8,128], index: 0, kind: input, shape index: {}]
  %s1 = inlined_call_operand.vmem [shape: f32[128,128], index: 1, kind: input, shape index: {}]
  %s2 = inlined_call_operand.vmem [shape: f32[1,128], index: 2, kind: input, shape index: {}]
  %s3 = inlined_call_operand.vmem [shape: f32[128,32], index: 3, kind: input, shape index: {}]
  %s4 = inlined_call_operand.<no memory space> [shape: f32[1], index: 4, kind: input, shape index: {}]
  %s5 = inlined_call_operand.vmem [shape: f32[8,32], index: 5, kind: output, shape index: {}]
  %s6 = sld [smem:[#allocation0]]
  $region30: #{mlp_forward.1} parent=0
    _
  %s8 = ssub.s32 1, %s6
  %s9 = scalar_select 0, %s8, %s6
  %10 = sst [smem:[#allocation2]] %s4
  // Predicated region
  $region2: #{mlp_forward.1} parent=0 // pred_check
    _
  $region3: #{mlp_forward.1} parent=0 // pred_check_branch
    %12 = sbr.rel (0) target = $region5
  $region4: #{mlp_forward.1} parent=0 // pred_region
    _
  $region5: #{mlp_forward.1} parent=0 // pred_fallthru
    _
  // Predicated region
  $region6: #{mlp_forward.1} parent=0 // pred_check
    _
  $region7: #{mlp_forward.1} parent=0 // pred_check_branch
    %14 = sbr.rel (0) target = $region9
  $region8: #{mlp_forward.1} parent=0 // pred_region
    _
  $region9: #{mlp_forward.1} parent=0 // pred_fallthru
    _
  // Predicated region
  $region10: #{mlp_forward.1} parent=0 // pred_check
    _
  $region11: #{mlp_forward.1} parent=0 // pred_check_branch
    %16 = sbr.rel (0) target = $region13
  $region12: #{mlp_forward.1} parent=0 // pred_region
    _
  $region13: #{mlp_forward.1} parent=0 // pred_fallthru
    _
  // Predicated region
  $region14: #{mlp_forward.1} parent=0 // pred_check
    _
  $region15: #{mlp_forward.1} parent=0 // pred_check_branch
    %18 = sbr.rel (0) target = $region17
  $region16: #{mlp_forward.1} parent=0 // pred_region
    _
  $region17: #{mlp_forward.1} parent=0 // pred_fallthru
    _
  // Predicated region
  $region18: #{mlp_forward.1} parent=0 // pred_check
    _
  $region19: #{mlp_forward.1} parent=0 // pred_check_branch
    %20 = sbr.rel (0) target = $region21
  $region20: #{mlp_forward.1} parent=0 // pred_region
    _
  $region21: #{mlp_forward.1} parent=0 // pred_fallthru
    _
  %v21 = vld [vmem:[%s0] sm:$0xff]
  %v22 = vld [vmem:[%s1] sm:$0xff]
  %v23 = vld [vmem:[%s1 + $0x8] sm:$0xff]
  %v24 = vld [vmem:[%s1 + $0x10] sm:$0xff]
  %v25 = vld [vmem:[%s1 + $0x18] sm:$0xff]
  %v26 = vld [vmem:[%s1 + $0x20] sm:$0xff]
  %v27 = vld [vmem:[%s1 + $0x28] sm:$0xff]
  %v28 = vld [vmem:[%s1 + $0x30] sm:$0xff]
  %v29 = vld [vmem:[%s1 + $0x38] sm:$0xff]
  %v30 = vld [vmem:[%s1 + $0x40] sm:$0xff]
  %v31 = vld [vmem:[%s1 + $0x48] sm:$0xff]
  %v32 = vld [vmem:[%s1 + $0x50] sm:$0xff]
  %v33 = vld [vmem:[%s1 + $0x58] sm:$0xff]
  %v34 = vld [vmem:[%s1 + $0x60] sm:$0xff]
  %v35 = vld [vmem:[%s1 + $0x68] sm:$0xff]
  %v36 = vld [vmem:[%s1 + $0x70] sm:$0xff]
  %v37 = vld [vmem:[%s1 + $0x78] sm:$0xff]
  %v38 = vld [vmem:[%s2] sm:$0x1]
  %v40 = vlaneseq
  %v41 = vshrl.u32 %v40, 7
  %v42 = vsub.s32 0, %v41
  %v43 = vrot.slane %v38, %v42
  %45 = vmatprep.subr.mxu0 0.0
  %v46 = vand.u32 %v22, 4294901760
  %47 = vmatpush1.msra.mxu0 %v46
  %48 = vmatprep.subr.mxu0 0.0
  %v49 = vand.u32 %v23, 4294901760
  %50 = vmatpush1.msra.mxu0 %v49
  %51 = vmatprep.subr.mxu0 0.0
  %v52 = vand.u32 %v24, 4294901760
  %53 = vmatpush1.msra.mxu0 %v52
  %54 = vmatprep.subr.mxu0 0.0
  %v55 = vand.u32 %v25, 4294901760
  %56 = vmatpush1.msra.mxu0 %v55
  %57 = vmatprep.subr.mxu0 0.0
  %v58 = vand.u32 %v26, 4294901760
  %59 = vmatpush1.msra.mxu0 %v58
  %60 = vmatprep.subr.mxu0 0.0
  %v61 = vand.u32 %v27, 4294901760
  %62 = vmatpush1.msra.mxu0 %v61
  %63 = vmatprep.subr.mxu0 0.0
  %v64 = vand.u32 %v28, 4294901760
  %65 = vmatpush1.msra.mxu0 %v64
  %66 = vmatprep.subr.mxu0 0.0
  %v67 = vand.u32 %v29, 4294901760
  %68 = vmatpush1.msra.mxu0 %v67
  %69 = vmatprep.subr.mxu0 0.0
  %v70 = vand.u32 %v30, 4294901760
  %71 = vmatpush1.msra.mxu0 %v70
  %72 = vmatprep.subr.mxu0 0.0
  %v73 = vand.u32 %v31, 4294901760
  %74 = vmatpush1.msra.mxu0 %v73
  %75 = vmatprep.subr.mxu0 0.0
  %v76 = vand.u32 %v32, 4294901760
  %77 = vmatpush1.msra.mxu0 %v76
  %78 = vmatprep.subr.mxu0 0.0
  %v79 = vand.u32 %v33, 4294901760
  %80 = vmatpush1.msra.mxu0 %v79
  %81 = vmatprep.subr.mxu0 0.0
  %v82 = vand.u32 %v34, 4294901760
  %83 = vmatpush1.msra.mxu0 %v82
  %84 = vmatprep.subr.mxu0 0.0
  %v85 = vand.u32 %v35, 4294901760
  %86 = vmatpush1.msra.mxu0 %v85
  %87 = vmatprep.subr.mxu0 0.0
  %v88 = vand.u32 %v36, 4294901760
  %89 = vmatpush1.msra.mxu0 %v88
  %90 = vmatprep.subr.mxu0 0.0
  %v91 = vand.u32 %v37, 4294901760
  %92 = vmatpush1.msra.mxu0 %v91
  %93 = vmatprep.subr.mxu0 0.0
  %94 = vmatpush1.msra.mxu0 0.0
  %95 = vmatprep.subr.mxu0 0.0
  %96 = vmatpush1.msra.mxu0 0.0
  %97 = vmatprep.subr.mxu0 0.0
  %98 = vmatpush1.msra.mxu0 0.0
  %99 = vmatprep.subr.mxu0 0.0
  %100 = vmatpush1.msra.mxu0 0.0
  %101 = vmatprep.subr.mxu0 0.0
  %102 = vmatpush1.msra.mxu0 0.0
  %103 = vmatprep.subr.mxu0 0.0
  %104 = vmatpush1.msra.mxu0 0.0
  %105 = vmatprep.subr.mxu0 0.0
  %106 = vmatpush1.msra.mxu0 0.0
  %107 = vmatprep.subr.mxu0 0.0
  %108 = vmatpush1.msra.mxu0 0.0
  %109 = vmatprep.subr.mxu0 0.0
  %110 = vmatpush1.msra.mxu0 0.0
  %111 = vmatprep.subr.mxu0 0.0
  %112 = vmatpush1.msra.mxu0 0.0
  %113 = vmatprep.subr.mxu0 0.0
  %114 = vmatpush1.msra.mxu0 0.0
  %115 = vmatprep.subr.mxu0 0.0
  %116 = vmatpush1.msra.mxu0 0.0
  %117 = vmatprep.subr.mxu0 0.0
  %118 = vmatpush1.msra.mxu0 0.0
  %119 = vmatprep.subr.mxu0 0.0
  %120 = vmatpush1.msra.mxu0 0.0
  %121 = vmatprep.subr.mxu0 0.0
  %122 = vmatpush1.msra.mxu0 0.0
  %123 = vmatprep.subr.mxu0 0.0
  %124 = vmatpush1.msra.mxu0 0.0
  %125 = vmatprep.mubr.f32.mxu0 0.0
  %v126 = vand.u32 %v21, 4294901760
  %v127 = vsub.f32 %v21, %v126
  %v128 = vand.u32 %v127, 4294901760
  %v129 = vsub.f32 %v127, %v128
  %v130 = vand.u32 %v129, 4294901760
  %131 = vmatmul.mubr.f32.gmra.mrb[0].mxu0 %v130
  %v132 = vpop.f32.mrb[0].mxu0
  %v133 = vadd.f32 %v43, %v132
  %v134 = vpop.f32.mrb[0].mxu0
  %135 = vdwg.mxu0
  %136 = vmatprep.subr.mxu0 0.0
  %v137 = vand.u32 %v22, 4294901760
  %v138 = vsub.f32 %v22, %v137
  %v139 = vand.u32 %v138, 4294901760
  %v140 = vsub.f32 %v138, %v139
  %v141 = vand.u32 %v140, 4294901760
  %142 = vmatpush1.msra.mxu0 %v141
  %143 = vmatprep.subr.mxu0 0.0
  %v144 = vand.u32 %v23, 4294901760
  %v145 = vsub.f32 %v23, %v144
  %v146 = vand.u32 %v145, 4294901760
  %v147 = vsub.f32 %v145, %v146
  %v148 = vand.u32 %v147, 4294901760
  %149 = vmatpush1.msra.mxu0 %v148
  %150 = vmatprep.subr.mxu0 0.0
  %v151 = vand.u32 %v24, 4294901760
  %v152 = vsub.f32 %v24, %v151
  %v153 = vand.u32 %v152, 4294901760
  %v154 = vsub.f32 %v152, %v153
  %v155 = vand.u32 %v154, 4294901760
  %156 = vmatpush1.msra.mxu0 %v155
  %157 = vmatprep.subr.mxu0 0.0
  %v158 = vand.u32 %v25, 4294901760
  %v159 = vsub.f32 %v25, %v158
  %v160 = vand.u32 %v159, 4294901760
  %v161 = vsub.f32 %v159, %v160
  %v162 = vand.u32 %v161, 4294901760
  %163 = vmatpush1.msra.mxu0 %v162
  %164 = vmatprep.subr.mxu0 0.0
  %v165 = vand.u32 %v26, 4294901760
  %v166 = vsub.f32 %v26, %v165
  %v167 = vand.u32 %v166, 4294901760
  %v168 = vsub.f32 %v166, %v167
  %v169 = vand.u32 %v168, 4294901760
  %170 = vmatpush1.msra.mxu0 %v169
  %171 = vmatprep.subr.mxu0 0.0
  %v172 = vand.u32 %v27, 4294901760
  %v173 = vsub.f32 %v27, %v172
  %v174 = vand.u32 %v173, 4294901760
  %v175 = vsub.f32 %v173, %v174
  %v176 = vand.u32 %v175, 4294901760
  %177 = vmatpush1.msra.mxu0 %v176
  %178 = vmatprep.subr.mxu0 0.0
  %v179 = vand.u32 %v28, 4294901760
  %v180 = vsub.f32 %v28, %v179
  %v181 = vand.u32 %v180, 4294901760
  %v182 = vsub.f32 %v180, %v181
  %v183 = vand.u32 %v182, 4294901760
  %184 = vmatpush1.msra.mxu0 %v183
  %185 = vmatprep.subr.mxu0 0.0
  %v186 = vand.u32 %v29, 4294901760
  %v187 = vsub.f32 %v29, %v186
  %v188 = vand.u32 %v187, 4294901760
  %v189 = vsub.f32 %v187, %v188
  %v190 = vand.u32 %v189, 4294901760
  %191 = vmatpush1.msra.mxu0 %v190
  %192 = vmatprep.subr.mxu0 0.0
  %v193 = vand.u32 %v30, 4294901760
  %v194 = vsub.f32 %v30, %v193
  %v195 = vand.u32 %v194, 4294901760
  %v196 = vsub.f32 %v194, %v195
  %v197 = vand.u32 %v196, 4294901760
  %198 = vmatpush1.msra.mxu0 %v197
  %199 = vmatprep.subr.mxu0 0.0
  %v200 = vand.u32 %v31, 4294901760
  %v201 = vsub.f32 %v31, %v200
  %v202 = vand.u32 %v201, 4294901760
  %v203 = vsub.f32 %v201, %v202
  %v204 = vand.u32 %v203, 4294901760
  %205 = vmatpush1.msra.mxu0 %v204
  %206 = vmatprep.subr.mxu0 0.0
  %v207 = vand.u32 %v32, 4294901760
  %v208 = vsub.f32 %v32, %v207
  %v209 = vand.u32 %v208, 4294901760
  %v210 = vsub.f32 %v208, %v209
  %v211 = vand.u32 %v210, 4294901760
  %212 = vmatpush1.msra.mxu0 %v211
  %213 = vmatprep.subr.mxu0 0.0
  %v214 = vand.u32 %v33, 4294901760
  %v215 = vsub.f32 %v33, %v214
  %v216 = vand.u32 %v215, 4294901760
  %v217 = vsub.f32 %v215, %v216
  %v218 = vand.u32 %v217, 4294901760
  %219 = vmatpush1.msra.mxu0 %v218
  %220 = vmatprep.subr.mxu0 0.0
  %v221 = vand.u32 %v34, 4294901760
  %v222 = vsub.f32 %v34, %v221
  %v223 = vand.u32 %v222, 4294901760
  %v224 = vsub.f32 %v222, %v223
  %v225 = vand.u32 %v224, 4294901760
  %226 = vmatpush1.msra.mxu0 %v225
  %227 = vmatprep.subr.mxu0 0.0
  %v228 = vand.u32 %v35, 4294901760
  %v229 = vsub.f32 %v35, %v228
  %v230 = vand.u32 %v229, 4294901760
  %v231 = vsub.f32 %v229, %v230
  %v232 = vand.u32 %v231, 4294901760
  %233 = vmatpush1.msra.mxu0 %v232
  %234 = vmatprep.subr.mxu0 0.0
  %v235 = vand.u32 %v36, 4294901760
  %v236 = vsub.f32 %v36, %v235
  %v237 = vand.u32 %v236, 4294901760
  %v238 = vsub.f32 %v236, %v237
  %v239 = vand.u32 %v238, 4294901760
  %240 = vmatpush1.msra.mxu0 %v239
  %241 = vmatprep.subr.mxu0 0.0
  %v242 = vand.u32 %v37, 4294901760
  %v243 = vsub.f32 %v37, %v242
  %v244 = vand.u32 %v243, 4294901760
  %v245 = vsub.f32 %v243, %v244
  %v246 = vand.u32 %v245, 4294901760
  %247 = vmatpush1.msra.mxu0 %v246
  %248 = vmatprep.subr.mxu0 0.0
  %249 = vmatpush1.msra.mxu0 0.0
  %250 = vmatprep.subr.mxu0 0.0
  %251 = vmatpush1.msra.mxu0 0.0
  %252 = vmatprep.subr.mxu0 0.0
  %253 = vmatpush1.msra.mxu0 0.0
  %254 = vmatprep.subr.mxu0 0.0
  %255 = vmatpush1.msra.mxu0 0.0
  %256 = vmatprep.subr.mxu0 0.0
  %257 = vmatpush1.msra.mxu0 0.0
  %258 = vmatprep.subr.mxu0 0.0
  %259 = vmatpush1.msra.mxu0 0.0
  %260 = vmatprep.subr.mxu0 0.0
  %261 = vmatpush1.msra.mxu0 0.0
  %262 = vmatprep.subr.mxu0 0.0
  %263 = vmatpush1.msra.mxu0 0.0
  %264 = vmatprep.subr.mxu0 0.0
  %265 = vmatpush1.msra.mxu0 0.0
  %266 = vmatprep.subr.mxu0 0.0
  %267 = vmatpush1.msra.mxu0 0.0
  %268 = vmatprep.subr.mxu0 0.0
  %269 = vmatpush1.msra.mxu0 0.0
  %270 = vmatprep.subr.mxu0 0.0
  %271 = vmatpush1.msra.mxu0 0.0
  %272 = vmatprep.subr.mxu0 0.0
  %273 = vmatpush1.msra.mxu0 0.0
  %274 = vmatprep.subr.mxu0 0.0
  %275 = vmatpush1.msra.mxu0 0.0
  %276 = vmatprep.subr.mxu0 0.0
  %277 = vmatpush1.msra.mxu0 0.0
  %278 = vmatprep.subr.mxu0 0.0
  %279 = vmatpush1.msra.mxu0 0.0
  %280 = vmatprep.mubr.f32.mxu0 0.0
  %v281 = vand.u32 %v21, 4294901760
  %282 = vmatmul.mubr.f32.gmra.mrb[0].mxu0 %v281
  %v283 = vpop.f32.mrb[0].mxu0
  %v284 = vadd.f32 %v133, %v283
  %v285 = vpop.f32.mrb[0].mxu0
  %286 = vdwg.mxu0
  %287 = vmatprep.subr.mxu0 0.0
  %v288 = vand.u32 %v22, 4294901760
  %v289 = vsub.f32 %v22, %v288
  %290 = vmatpush1.msra.mxu0 %v289
  %291 = vmatprep.subr.mxu0 0.0
  %v292 = vand.u32 %v23, 4294901760
  %v293 = vsub.f32 %v23, %v292
  %294 = vmatpush1.msra.mxu0 %v293
  %295 = vmatprep.subr.mxu0 0.0
  %v296 = vand.u32 %v24, 4294901760
  %v297 = vsub.f32 %v24, %v296
  %298 = vmatpush1.msra.mxu0 %v297
  %299 = vmatprep.subr.mxu0 0.0
  %v300 = vand.u32 %v25, 4294901760
  %v301 = vsub.f32 %v25, %v300
  %302 = vmatpush1.msra.mxu0 %v301
  %303 = vmatprep.subr.mxu0 0.0
  %v304 = vand.u32 %v26, 4294901760
  %v305 = vsub.f32 %v26, %v304
  %306 = vmatpush1.msra.mxu0 %v305
  %307 = vmatprep.subr.mxu0 0.0
  %v308 = vand.u32 %v27, 4294901760
  %v309 = vsub.f32 %v27, %v308
  %310 = vmatpush1.msra.mxu0 %v309
  %311 = vmatprep.subr.mxu0 0.0
  %v312 = vand.u32 %v28, 4294901760
  %v313 = vsub.f32 %v28, %v312
  %314 = vmatpush1.msra.mxu0 %v313
  %315 = vmatprep.subr.mxu0 0.0
  %v316 = vand.u32 %v29, 4294901760
  %v317 = vsub.f32 %v29, %v316
  %318 = vmatpush1.msra.mxu0 %v317
  %319 = vmatprep.subr.mxu0 0.0
  %v320 = vand.u32 %v30, 4294901760
  %v321 = vsub.f32 %v30, %v320
  %322 = vmatpush1.msra.mxu0 %v321
  %323 = vmatprep.subr.mxu0 0.0
  %v324 = vand.u32 %v31, 4294901760
  %v325 = vsub.f32 %v31, %v324
  %326 = vmatpush1.msra.mxu0 %v325
  %327 = vmatprep.subr.mxu0 0.0
  %v328 = vand.u32 %v32, 4294901760
  %v329 = vsub.f32 %v32, %v328
  %330 = vmatpush1.msra.mxu0 %v329
  %331 = vmatprep.subr.mxu0 0.0
  %v332 = vand.u32 %v33, 4294901760
  %v333 = vsub.f32 %v33, %v332
  %334 = vmatpush1.msra.mxu0 %v333
  %335 = vmatprep.subr.mxu0 0.0
  %v336 = vand.u32 %v34, 4294901760
  %v337 = vsub.f32 %v34, %v336
  %338 = vmatpush1.msra.mxu0 %v337
  %339 = vmatprep.subr.mxu0 0.0
  %v340 = vand.u32 %v35, 4294901760
  %v341 = vsub.f32 %v35, %v340
  %342 = vmatpush1.msra.mxu0 %v341
  %343 = vmatprep.subr.mxu0 0.0
  %v344 = vand.u32 %v36, 4294901760
  %v345 = vsub.f32 %v36, %v344
  %346 = vmatpush1.msra.mxu0 %v345
  %347 = vmatprep.subr.mxu0 0.0
  %v348 = vand.u32 %v37, 4294901760
  %v349 = vsub.f32 %v37, %v348
  %350 = vmatpush1.msra.mxu0 %v349
  %351 = vmatprep.subr.mxu0 0.0
  %352 = vmatpush1.msra.mxu0 0.0
  %353 = vmatprep.subr.mxu0 0.0
  %354 = vmatpush1.msra.mxu0 0.0
  %355 = vmatprep.subr.mxu0 0.0
  %356 = vmatpush1.msra.mxu0 0.0
  %357 = vmatprep.subr.mxu0 0.0
  %358 = vmatpush1.msra.mxu0 0.0
  %359 = vmatprep.subr.mxu0 0.0
  %360 = vmatpush1.msra.mxu0 0.0
  %361 = vmatprep.subr.mxu0 0.0
  %362 = vmatpush1.msra.mxu0 0.0
  %363 = vmatprep.subr.mxu0 0.0
  %364 = vmatpush1.msra.mxu0 0.0
  %365 = vmatprep.subr.mxu0 0.0
  %366 = vmatpush1.msra.mxu0 0.0
  %367 = vmatprep.subr.mxu0 0.0
  %368 = vmatpush1.msra.mxu0 0.0
  %369 = vmatprep.subr.mxu0 0.0
  %370 = vmatpush1.msra.mxu0 0.0
  %371 = vmatprep.subr.mxu0 0.0
  %372 = vmatpush1.msra.mxu0 0.0
  %373 = vmatprep.subr.mxu0 0.0
  %374 = vmatpush1.msra.mxu0 0.0
  %375 = vmatprep.subr.mxu0 0.0
  %376 = vmatpush1.msra.mxu0 0.0
  %377 = vmatprep.subr.mxu0 0.0
  %378 = vmatpush1.msra.mxu0 0.0
  %379 = vmatprep.subr.mxu0 0.0
  %380 = vmatpush1.msra.mxu0 0.0
  %381 = vmatprep.subr.mxu0 0.0
  %382 = vmatpush1.msra.mxu0 0.0
  %383 = vmatprep.mubr.f32.mxu0 0.0
  %v384 = vand.u32 %v21, 4294901760
  %v385 = vsub.f32 %v21, %v384
  %386 = vmatmul.mubr.f32.gmra.mrb[0].mxu0 %v385
  %v387 = vpop.f32.mrb[0].mxu0
  %v388 = vadd.f32 %v284, %v387
  %v389 = vpop.f32.mrb[0].mxu0
  %390 = vdwg.mxu0
  %391 = vmatprep.subr.mxu0 0.0
  %v392 = vand.u32 %v22, 4294901760
  %393 = vmatpush1.msra.mxu0 %v392
  %394 = vmatprep.subr.mxu0 0.0
  %v395 = vand.u32 %v23, 4294901760
  %396 = vmatpush1.msra.mxu0 %v395
  %397 = vmatprep.subr.mxu0 0.0
  %v398 = vand.u32 %v24, 4294901760
  %399 = vmatpush1.msra.mxu0 %v398
  %400 = vmatprep.subr.mxu0 0.0
  %v401 = vand.u32 %v25, 4294901760
  %402 = vmatpush1.msra.mxu0 %v401
  %403 = vmatprep.subr.mxu0 0.0
  %v404 = vand.u32 %v26, 4294901760
  %405 = vmatpush1.msra.mxu0 %v404
  %406 = vmatprep.subr.mxu0 0.0
  %v407 = vand.u32 %v27, 4294901760
  %408 = vmatpush1.msra.mxu0 %v407
  %409 = vmatprep.subr.mxu0 0.0
  %v410 = vand.u32 %v28, 4294901760
  %411 = vmatpush1.msra.mxu0 %v410
  %412 = vmatprep.subr.mxu0 0.0
  %v413 = vand.u32 %v29, 4294901760
  %414 = vmatpush1.msra.mxu0 %v413
  %415 = vmatprep.subr.mxu0 0.0
  %v416 = vand.u32 %v30, 4294901760
  %417 = vmatpush1.msra.mxu0 %v416
  %418 = vmatprep.subr.mxu0 0.0
  %v419 = vand.u32 %v31, 4294901760
  %420 = vmatpush1.msra.mxu0 %v419
  %421 = vmatprep.subr.mxu0 0.0
  %v422 = vand.u32 %v32, 4294901760
  %423 = vmatpush1.msra.mxu0 %v422
  %424 = vmatprep.subr.mxu0 0.0
  %v425 = vand.u32 %v33, 4294901760
  %426 = vmatpush1.msra.mxu0 %v425
  %427 = vmatprep.subr.mxu0 0.0
  %v428 = vand.u32 %v34, 4294901760
  %429 = vmatpush1.msra.mxu0 %v428
  %430 = vmatprep.subr.mxu0 0.0
  %v431 = vand.u32 %v35, 4294901760
  %432 = vmatpush1.msra.mxu0 %v431
  %433 = vmatprep.subr.mxu0 0.0
  %v434 = vand.u32 %v36, 4294901760
  %435 = vmatpush1.msra.mxu0 %v434
  %436 = vmatprep.subr.mxu0 0.0
  %v437 = vand.u32 %v37, 4294901760
  %438 = vmatpush1.msra.mxu0 %v437
  %439 = vmatprep.subr.mxu0 0.0
  %440 = vmatpush1.msra.mxu0 0.0
  %441 = vmatprep.subr.mxu0 0.0
  %442 = vmatpush1.msra.mxu0 0.0
  %443 = vmatprep.subr.mxu0 0.0
  %444 = vmatpush1.msra.mxu0 0.0
  %445 = vmatprep.subr.mxu0 0.0
  %446 = vmatpush1.msra.mxu0 0.0
  %447 = vmatprep.subr.mxu0 0.0
  %448 = vmatpush1.msra.mxu0 0.0
  %449 = vmatprep.subr.mxu0 0.0
  %450 = vmatpush1.msra.mxu0 0.0
  %451 = vmatprep.subr.mxu0 0.0
  %452 = vmatpush1.msra.mxu0 0.0
  %453 = vmatprep.subr.mxu0 0.0
  %454 = vmatpush1.msra.mxu0 0.0
  %455 = vmatprep.subr.mxu0 0.0
  %456 = vmatpush1.msra.mxu0 0.0
  %457 = vmatprep.subr.mxu0 0.0
  %458 = vmatpush1.msra.mxu0 0.0
  %459 = vmatprep.subr.mxu0 0.0
  %460 = vmatpush1.msra.mxu0 0.0
  %461 = vmatprep.subr.mxu0 0.0
  %462 = vmatpush1.msra.mxu0 0.0
  %463 = vmatprep.subr.mxu0 0.0
  %464 = vmatpush1.msra.mxu0 0.0
  %465 = vmatprep.subr.mxu0 0.0
  %466 = vmatpush1.msra.mxu0 0.0
  %467 = vmatprep.subr.mxu0 0.0
  %468 = vmatpush1.msra.mxu0 0.0
  %469 = vmatprep.subr.mxu0 0.0
  %470 = vmatpush1.msra.mxu0 0.0
  %471 = vmatprep.mubr.f32.mxu0 0.0
  %v472 = vand.u32 %v21, 4294901760
  %v473 = vsub.f32 %v21, %v472
  %v474 = vand.u32 %v473, 4294901760
  %475 = vmatmul.mubr.f32.gmra.mrb[0].mxu0 %v474
  %v476 = vpop.f32.mrb[0].mxu0
  %v477 = vadd.f32 %v388, %v476
  %v478 = vpop.f32.mrb[0].mxu0
  %479 = vdwg.mxu0
  %480 = vmatprep.subr.mxu0 0.0
  %v481 = vand.u32 %v22, 4294901760
  %v482 = vsub.f32 %v22, %v481
  %v483 = vand.u32 %v482, 4294901760
  %484 = vmatpush1.msra.mxu0 %v483
  %485 = vmatprep.subr.mxu0 0.0
  %v486 = vand.u32 %v23, 4294901760
  %v487 = vsub.f32 %v23, %v486
  %v488 = vand.u32 %v487, 4294901760
  %489 = vmatpush1.msra.mxu0 %v488
  %490 = vmatprep.subr.mxu0 0.0
  %v491 = vand.u32 %v24, 4294901760
  %v492 = vsub.f32 %v24, %v491
  %v493 = vand.u32 %v492, 4294901760
  %494 = vmatpush1.msra.mxu0 %v493
  %495 = vmatprep.subr.mxu0 0.0
  %v496 = vand.u32 %v25, 4294901760
  %v497 = vsub.f32 %v25, %v496
  %v498 = vand.u32 %v497, 4294901760
  %499 = vmatpush1.msra.mxu0 %v498
  %500 = vmatprep.subr.mxu0 0.0
  %v501 = vand.u32 %v26, 4294901760
  %v502 = vsub.f32 %v26, %v501
  %v503 = vand.u32 %v502, 4294901760
  %504 = vmatpush1.msra.mxu0 %v503
  %505 = vmatprep.subr.mxu0 0.0
  %v506 = vand.u32 %v27, 4294901760
  %v507 = vsub.f32 %v27, %v506
  %v508 = vand.u32 %v507, 4294901760
  %509 = vmatpush1.msra.mxu0 %v508
  %510 = vmatprep.subr.mxu0 0.0
  %v511 = vand.u32 %v28, 4294901760
  %v512 = vsub.f32 %v28, %v511
  %v513 = vand.u32 %v512, 4294901760
  %514 = vmatpush1.msra.mxu0 %v513
  %515 = vmatprep.subr.mxu0 0.0
  %v516 = vand.u32 %v29, 4294901760
  %v517 = vsub.f32 %v29, %v516
  %v518 = vand.u32 %v517, 4294901760
  %519 = vmatpush1.msra.mxu0 %v518
  %520 = vmatprep.subr.mxu0 0.0
  %v521 = vand.u32 %v30, 4294901760
  %v522 = vsub.f32 %v30, %v521
  %v523 = vand.u32 %v522, 4294901760
  %524 = vmatpush1.msra.mxu0 %v523
  %525 = vmatprep.subr.mxu0 0.0
  %v526 = vand.u32 %v31, 4294901760
  %v527 = vsub.f32 %v31, %v526
  %v528 = vand.u32 %v527, 4294901760
  %529 = vmatpush1.msra.mxu0 %v528
  %530 = vmatprep.subr.mxu0 0.0
  %v531 = vand.u32 %v32, 4294901760
  %v532 = vsub.f32 %v32, %v531
  %v533 = vand.u32 %v532, 4294901760
  %534 = vmatpush1.msra.mxu0 %v533
  %535 = vmatprep.subr.mxu0 0.0
  %v536 = vand.u32 %v33, 4294901760
  %v537 = vsub.f32 %v33, %v536
  %v538 = vand.u32 %v537, 4294901760
  %539 = vmatpush1.msra.mxu0 %v538
  %540 = vmatprep.subr.mxu0 0.0
  %v541 = vand.u32 %v34, 4294901760
  %v542 = vsub.f32 %v34, %v541
  %v543 = vand.u32 %v542, 4294901760
  %544 = vmatpush1.msra.mxu0 %v543
  %545 = vmatprep.subr.mxu0 0.0
  %v546 = vand.u32 %v35, 4294901760
  %v547 = vsub.f32 %v35, %v546
  %v548 = vand.u32 %v547, 4294901760
  %549 = vmatpush1.msra.mxu0 %v548
  %550 = vmatprep.subr.mxu0 0.0
  %v551 = vand.u32 %v36, 4294901760
  %v552 = vsub.f32 %v36, %v551
  %v553 = vand.u32 %v552, 4294901760
  %554 = vmatpush1.msra.mxu0 %v553
  %555 = vmatprep.subr.mxu0 0.0
  %v556 = vand.u32 %v37, 4294901760
  %v557 = vsub.f32 %v37, %v556
  %v558 = vand.u32 %v557, 4294901760
  %559 = vmatpush1.msra.mxu0 %v558
  %560 = vmatprep.subr.mxu0 0.0
  %561 = vmatpush1.msra.mxu0 0.0
  %562 = vmatprep.subr.mxu0 0.0
  %563 = vmatpush1.msra.mxu0 0.0
  %564 = vmatprep.subr.mxu0 0.0
  %565 = vmatpush1.msra.mxu0 0.0
  %566 = vmatprep.subr.mxu0 0.0
  %567 = vmatpush1.msra.mxu0 0.0
  %568 = vmatprep.subr.mxu0 0.0
  %569 = vmatpush1.msra.mxu0 0.0
  %570 = vmatprep.subr.mxu0 0.0
  %571 = vmatpush1.msra.mxu0 0.0
  %572 = vmatprep.subr.mxu0 0.0
  %573 = vmatpush1.msra.mxu0 0.0
  %574 = vmatprep.subr.mxu0 0.0
  %575 = vmatpush1.msra.mxu0 0.0
  %576 = vmatprep.subr.mxu0 0.0
  %577 = vmatpush1.msra.mxu0 0.0
  %578 = vmatprep.subr.mxu0 0.0
  %579 = vmatpush1.msra.mxu0 0.0
  %580 = vmatprep.subr.mxu0 0.0
  %581 = vmatpush1.msra.mxu0 0.0
  %582 = vmatprep.subr.mxu0 0.0
  %583 = vmatpush1.msra.mxu0 0.0
  %584 = vmatprep.subr.mxu0 0.0
  %585 = vmatpush1.msra.mxu0 0.0
  %586 = vmatprep.subr.mxu0 0.0
  %587 = vmatpush1.msra.mxu0 0.0
  %588 = vmatprep.subr.mxu0 0.0
  %589 = vmatpush1.msra.mxu0 0.0
  %590 = vmatprep.subr.mxu0 0.0
  %591 = vmatpush1.msra.mxu0 0.0
  %592 = vmatprep.mubr.f32.mxu0 0.0
  %v593 = vand.u32 %v21, 4294901760
  %594 = vmatmul.mubr.f32.gmra.mrb[0].mxu0 %v593
  %v595 = vpop.f32.mrb[0].mxu0
  %v596 = vadd.f32 %v477, %v595
  %v597 = vpop.f32.mrb[0].mxu0
  %598 = vdwg.mxu0
  %599 = vmatprep.subr.mxu0 0.0
  %v600 = vand.u32 %v22, 4294901760
  %601 = vmatpush1.msra.mxu0 %v600
  %602 = vmatprep.subr.mxu0 0.0
  %v603 = vand.u32 %v23, 4294901760
  %604 = vmatpush1.msra.mxu0 %v603
  %605 = vmatprep.subr.mxu0 0.0
  %v606 = vand.u32 %v24, 4294901760
  %607 = vmatpush1.msra.mxu0 %v606
  %608 = vmatprep.subr.mxu0 0.0
  %v609 = vand.u32 %v25, 4294901760
  %610 = vmatpush1.msra.mxu0 %v609
  %611 = vmatprep.subr.mxu0 0.0
  %v612 = vand.u32 %v26, 4294901760
  %613 = vmatpush1.msra.mxu0 %v612
  %614 = vmatprep.subr.mxu0 0.0
  %v615 = vand.u32 %v27, 4294901760
  %616 = vmatpush1.msra.mxu0 %v615
  %617 = vmatprep.subr.mxu0 0.0
  %v618 = vand.u32 %v28, 4294901760
  %619 = vmatpush1.msra.mxu0 %v618
  %620 = vmatprep.subr.mxu0 0.0
  %v621 = vand.u32 %v29, 4294901760
  %622 = vmatpush1.msra.mxu0 %v621
  %623 = vmatprep.subr.mxu0 0.0
  %v624 = vand.u32 %v30, 4294901760
  %625 = vmatpush1.msra.mxu0 %v624
  %626 = vmatprep.subr.mxu0 0.0
  %v627 = vand.u32 %v31, 4294901760
  %628 = vmatpush1.msra.mxu0 %v627
  %629 = vmatprep.subr.mxu0 0.0
  %v630 = vand.u32 %v32, 4294901760
  %631 = vmatpush1.msra.mxu0 %v630
  %632 = vmatprep.subr.mxu0 0.0
  %v633 = vand.u32 %v33, 4294901760
  %634 = vmatpush1.msra.mxu0 %v633
  %635 = vmatprep.subr.mxu0 0.0
  %v636 = vand.u32 %v34, 4294901760
  %637 = vmatpush1.msra.mxu0 %v636
  %638 = vmatprep.subr.mxu0 0.0
  %v639 = vand.u32 %v35, 4294901760
  %640 = vmatpush1.msra.mxu0 %v639
  %641 = vmatprep.subr.mxu0 0.0
  %v642 = vand.u32 %v36, 4294901760
  %643 = vmatpush1.msra.mxu0 %v642
  %644 = vmatprep.subr.mxu0 0.0
  %v645 = vand.u32 %v37, 4294901760
  %646 = vmatpush1.msra.mxu0 %v645
  %647 = vmatprep.subr.mxu0 0.0
  %648 = vmatpush1.msra.mxu0 0.0
  %649 = vmatprep.subr.mxu0 0.0
  %650 = vmatpush1.msra.mxu0 0.0
  %651 = vmatprep.subr.mxu0 0.0
  %652 = vmatpush1.msra.mxu0 0.0
  %653 = vmatprep.subr.mxu0 0.0
  %654 = vmatpush1.msra.mxu0 0.0
  %655 = vmatprep.subr.mxu0 0.0
  %656 = vmatpush1.msra.mxu0 0.0
  %657 = vmatprep.subr.mxu0 0.0
  %658 = vmatpush1.msra.mxu0 0.0
  %659 = vmatprep.subr.mxu0 0.0
  %660 = vmatpush1.msra.mxu0 0.0
  %661 = vmatprep.subr.mxu0 0.0
  %662 = vmatpush1.msra.mxu0 0.0
  %663 = vmatprep.subr.mxu0 0.0
  %664 = vmatpush1.msra.mxu0 0.0
  %665 = vmatprep.subr.mxu0 0.0
  %666 = vmatpush1.msra.mxu0 0.0
  %667 = vmatprep.subr.mxu0 0.0
  %668 = vmatpush1.msra.mxu0 0.0
  %669 = vmatprep.subr.mxu0 0.0
  %670 = vmatpush1.msra.mxu0 0.0
  %671 = vmatprep.subr.mxu0 0.0
  %672 = vmatpush1.msra.mxu0 0.0
  %673 = vmatprep.subr.mxu0 0.0
  %674 = vmatpush1.msra.mxu0 0.0
  %675 = vmatprep.subr.mxu0 0.0
  %676 = vmatpush1.msra.mxu0 0.0
  %677 = vmatprep.subr.mxu0 0.0
  %678 = vmatpush1.msra.mxu0 0.0
  %679 = vmatprep.mubr.f32.mxu0 0.0
  %v680 = vand.u32 %v21, 4294901760
  %681 = vmatmul.mubr.f32.gmra.mrb[0].mxu0 %v680
  %v682 = vpop.f32.mrb[0].mxu0
  %v683 = vadd.f32 %v596, %v682
  %v684 = vpop.f32.mrb[0].mxu0
  %685 = vdwg.mxu0
  %v686 = vmax.f32 %v683, 0.0
  %v687 = vld [vmem:[%s3] sm:$0xff]
  %v688 = vld [vmem:[%s3 + $0x8] sm:$0xff]
  %v689 = vld [vmem:[%s3 + $0x10] sm:$0xff]
  %v690 = vld [vmem:[%s3 + $0x18] sm:$0xff]
  %v691 = vld [vmem:[%s3 + $0x20] sm:$0xff]
  %v692 = vld [vmem:[%s3 + $0x28] sm:$0xff]
  %v693 = vld [vmem:[%s3 + $0x30] sm:$0xff]
  %v694 = vld [vmem:[%s3 + $0x38] sm:$0xff]
  %v695 = vld [vmem:[%s3 + $0x40] sm:$0xff]
  %v696 = vld [vmem:[%s3 + $0x48] sm:$0xff]
  %v697 = vld [vmem:[%s3 + $0x50] sm:$0xff]
  %v698 = vld [vmem:[%s3 + $0x58] sm:$0xff]
  %v699 = vld [vmem:[%s3 + $0x60] sm:$0xff]
  %v700 = vld [vmem:[%s3 + $0x68] sm:$0xff]
  %v701 = vld [vmem:[%s3 + $0x70] sm:$0xff]
  %v702 = vld [vmem:[%s3 + $0x78] sm:$0xff]
  %s703 = sld [smem:[#allocation2]]
  %v704 = vstv %s703
  %705 = vmatprep.subr.mxu0 0.0
  %v706 = vand.u32 %v687, 4294901760
  %707 = vmatpush1.msra.mxu0 %v706
  %708 = vmatprep.subr.mxu0 0.0
  %v709 = vand.u32 %v688, 4294901760
  %710 = vmatpush1.msra.mxu0 %v709
  %711 = vmatprep.subr.mxu0 0.0
  %v712 = vand.u32 %v689, 4294901760
  %713 = vmatpush1.msra.mxu0 %v712
  %714 = vmatprep.subr.mxu0 0.0
  %v715 = vand.u32 %v690, 4294901760
  %716 = vmatpush1.msra.mxu0 %v715
  %717 = vmatprep.subr.mxu0 0.0
  %v718 = vand.u32 %v691, 4294901760
  %719 = vmatpush1.msra.mxu0 %v718
  %720 = vmatprep.subr.mxu0 0.0
  %v721 = vand.u32 %v692, 4294901760
  %722 = vmatpush1.msra.mxu0 %v721
  %723 = vmatprep.subr.mxu0 0.0
  %v724 = vand.u32 %v693, 4294901760
  %725 = vmatpush1.msra.mxu0 %v724
  %726 = vmatprep.subr.mxu0 0.0
  %v727 = vand.u32 %v694, 4294901760
  %728 = vmatpush1.msra.mxu0 %v727
  %729 = vmatprep.subr.mxu0 0.0
  %v730 = vand.u32 %v695, 4294901760
  %731 = vmatpush1.msra.mxu0 %v730
  %732 = vmatprep.subr.mxu0 0.0
  %v733 = vand.u32 %v696, 4294901760
  %734 = vmatpush1.msra.mxu0 %v733
  %735 = vmatprep.subr.mxu0 0.0
  %v736 = vand.u32 %v697, 4294901760
  %737 = vmatpush1.msra.mxu0 %v736
  %738 = vmatprep.subr.mxu0 0.0
  %v739 = vand.u32 %v698, 4294901760
  %740 = vmatpush1.msra.mxu0 %v739
  %741 = vmatprep.subr.mxu0 0.0
  %v742 = vand.u32 %v699, 4294901760
  %743 = vmatpush1.msra.mxu0 %v742
  %744 = vmatprep.subr.mxu0 0.0
  %v745 = vand.u32 %v700, 4294901760
  %746 = vmatpush1.msra.mxu0 %v745
  %747 = vmatprep.subr.mxu0 0.0
  %v748 = vand.u32 %v701, 4294901760
  %749 = vmatpush1.msra.mxu0 %v748
  %750 = vmatprep.subr.mxu0 0.0
  %v751 = vand.u32 %v702, 4294901760
  %752 = vmatpush1.msra.mxu0 %v751
  %753 = vmatprep.subr.mxu0 0.0
  %754 = vmatpush1.msra.mxu0 0.0
  %755 = vmatprep.subr.mxu0 0.0
  %756 = vmatpush1.msra.mxu0 0.0
  %757 = vmatprep.subr.mxu0 0.0
  %758 = vmatpush1.msra.mxu0 0.0
  %759 = vmatprep.subr.mxu0 0.0
  %760 = vmatpush1.msra.mxu0 0.0
  %761 = vmatprep.subr.mxu0 0.0
  %762 = vmatpush1.msra.mxu0 0.0
  %763 = vmatprep.subr.mxu0 0.0
  %764 = vmatpush1.msra.mxu0 0.0
  %765 = vmatprep.subr.mxu0 0.0
  %766 = vmatpush1.msra.mxu0 0.0
  %767 = vmatprep.subr.mxu0 0.0
  %768 = vmatpush1.msra.mxu0 0.0
  %769 = vmatprep.subr.mxu0 0.0
  %770 = vmatpush1.msra.mxu0 0.0
  %771 = vmatprep.subr.mxu0 0.0
  %772 = vmatpush1.msra.mxu0 0.0
  %773 = vmatprep.subr.mxu0 0.0
  %774 = vmatpush1.msra.mxu0 0.0
  %775 = vmatprep.subr.mxu0 0.0
  %776 = vmatpush1.msra.mxu0 0.0
  %777 = vmatprep.subr.mxu0 0.0
  %778 = vmatpush1.msra.mxu0 0.0
  %779 = vmatprep.subr.mxu0 0.0
  %780 = vmatpush1.msra.mxu0 0.0
  %781 = vmatprep.subr.mxu0 0.0
  %782 = vmatpush1.msra.mxu0 0.0
  %783 = vmatprep.subr.mxu0 0.0
  %784 = vmatpush1.msra.mxu0 0.0
  %785 = vmatprep.mubr.f32.mxu0 0.0
  %v786 = vand.u32 %v686, 4294901760
  %v787 = vsub.f32 %v686, %v786
  %v788 = vand.u32 %v787, 4294901760
  %v789 = vsub.f32 %v787, %v788
  %v790 = vand.u32 %v789, 4294901760
  %791 = vmatmul.mubr.f32.gmra.mrb[0].mxu0 %v790
  %v792 = vpop.f32.mrb[0].mxu0
  %v793 = vadd.f32 %v704, %v792
  %v794 = vpop.f32.mrb[0].mxu0
  %795 = vdwg.mxu0
  %796 = vmatprep.subr.mxu0 0.0
  %v797 = vand.u32 %v687, 4294901760
  %v798 = vsub.f32 %v687, %v797
  %v799 = vand.u32 %v798, 4294901760
  %v800 = vsub.f32 %v798, %v799
  %v801 = vand.u32 %v800, 4294901760
  %802 = vmatpush1.msra.mxu0 %v801
  %803 = vmatprep.subr.mxu0 0.0
  %v804 = vand.u32 %v688, 4294901760
  %v805 = vsub.f32 %v688, %v804
  %v806 = vand.u32 %v805, 4294901760
  %v807 = vsub.f32 %v805, %v806
  %v808 = vand.u32 %v807, 4294901760
  %809 = vmatpush1.msra.mxu0 %v808
  %810 = vmatprep.subr.mxu0 0.0
  %v811 = vand.u32 %v689, 4294901760
  %v812 = vsub.f32 %v689, %v811
  %v813 = vand.u32 %v812, 4294901760
  %v814 = vsub.f32 %v812, %v813
  %v815 = vand.u32 %v814, 4294901760
  %816 = vmatpush1.msra.mxu0 %v815
  %817 = vmatprep.subr.mxu0 0.0
  %v818 = vand.u32 %v690, 4294901760
  %v819 = vsub.f32 %v690, %v818
  %v820 = vand.u32 %v819, 4294901760
  %v821 = vsub.f32 %v819, %v820
  %v822 = vand.u32 %v821, 4294901760
  %823 = vmatpush1.msra.mxu0 %v822
  %824 = vmatprep.subr.mxu0 0.0
  %v825 = vand.u32 %v691, 4294901760
  %v826 = vsub.f32 %v691, %v825
  %v827 = vand.u32 %v826, 4294901760
  %v828 = vsub.f32 %v826, %v827
  %v829 = vand.u32 %v828, 4294901760
  %830 = vmatpush1.msra.mxu0 %v829
  %831 = vmatprep.subr.mxu0 0.0
  %v832 = vand.u32 %v692, 4294901760
  %v833 = vsub.f32 %v692, %v832
  %v834 = vand.u32 %v833, 4294901760
  %v835 = vsub.f32 %v833, %v834
  %v836 = vand.u32 %v835, 4294901760
  %837 = vmatpush1.msra.mxu0 %v836
  %838 = vmatprep.subr.mxu0 0.0
  %v839 = vand.u32 %v693, 4294901760
  %v840 = vsub.f32 %v693, %v839
  %v841 = vand.u32 %v840, 4294901760
  %v842 = vsub.f32 %v840, %v841
  %v843 = vand.u32 %v842, 4294901760
  %844 = vmatpush1.msra.mxu0 %v843
  %845 = vmatprep.subr.mxu0 0.0
  %v846 = vand.u32 %v694, 4294901760
  %v847 = vsub.f32 %v694, %v846
  %v848 = vand.u32 %v847, 4294901760
  %v849 = vsub.f32 %v847, %v848
  %v850 = vand.u32 %v849, 4294901760
  %851 = vmatpush1.msra.mxu0 %v850
  %852 = vmatprep.subr.mxu0 0.0
  %v853 = vand.u32 %v695, 4294901760
  %v854 = vsub.f32 %v695, %v853
  %v855 = vand.u32 %v854, 4294901760
  %v856 = vsub.f32 %v854, %v855
  %v857 = vand.u32 %v856, 4294901760
  %858 = vmatpush1.msra.mxu0 %v857
  %859 = vmatprep.subr.mxu0 0.0
  %v860 = vand.u32 %v696, 4294901760
  %v861 = vsub.f32 %v696, %v860
  %v862 = vand.u32 %v861, 4294901760
  %v863 = vsub.f32 %v861, %v862
  %v864 = vand.u32 %v863, 4294901760
  %865 = vmatpush1.msra.mxu0 %v864
  %866 = vmatprep.subr.mxu0 0.0
  %v867 = vand.u32 %v697, 4294901760
  %v868 = vsub.f32 %v697, %v867
  %v869 = vand.u32 %v868, 4294901760
  %v870 = vsub.f32 %v868, %v869
  %v871 = vand.u32 %v870, 4294901760
  %872 = vmatpush1.msra.mxu0 %v871
  %873 = vmatprep.subr.mxu0 0.0
  %v874 = vand.u32 %v698, 4294901760
  %v875 = vsub.f32 %v698, %v874
  %v876 = vand.u32 %v875, 4294901760
  %v877 = vsub.f32 %v875, %v876
  %v878 = vand.u32 %v877, 4294901760
  %879 = vmatpush1.msra.mxu0 %v878
  %880 = vmatprep.subr.mxu0 0.0
  %v881 = vand.u32 %v699, 4294901760
  %v882 = vsub.f32 %v699, %v881
  %v883 = vand.u32 %v882, 4294901760
  %v884 = vsub.f32 %v882, %v883
  %v885 = vand.u32 %v884, 4294901760
  %886 = vmatpush1.msra.mxu0 %v885
  %887 = vmatprep.subr.mxu0 0.0
  %v888 = vand.u32 %v700, 4294901760
  %v889 = vsub.f32 %v700, %v888
  %v890 = vand.u32 %v889, 4294901760
  %v891 = vsub.f32 %v889, %v890
  %v892 = vand.u32 %v891, 4294901760
  %893 = vmatpush1.msra.mxu0 %v892
  %894 = vmatprep.subr.mxu0 0.0
  %v895 = vand.u32 %v701, 4294901760
  %v896 = vsub.f32 %v701, %v895
  %v897 = vand.u32 %v896, 4294901760
  %v898 = vsub.f32 %v896, %v897
  %v899 = vand.u32 %v898, 4294901760
  %900 = vmatpush1.msra.mxu0 %v899
  %901 = vmatprep.subr.mxu0 0.0
  %v902 = vand.u32 %v702, 4294901760
  %v903 = vsub.f32 %v702, %v902
  %v904 = vand.u32 %v903, 4294901760
  %v905 = vsub.f32 %v903, %v904
  %v906 = vand.u32 %v905, 4294901760
  %907 = vmatpush1.msra.mxu0 %v906
  %908 = vmatprep.subr.mxu0 0.0
  %909 = vmatpush1.msra.mxu0 0.0
  %910 = vmatprep.subr.mxu0 0.0
  %911 = vmatpush1.msra.mxu0 0.0
  %912 = vmatprep.subr.mxu0 0.0
  %913 = vmatpush1.msra.mxu0 0.0
  %914 = vmatprep.subr.mxu0 0.0
  %915 = vmatpush1.msra.mxu0 0.0
  %916 = vmatprep.subr.mxu0 0.0
  %917 = vmatpush1.msra.mxu0 0.0
  %918 = vmatprep.subr.mxu0 0.0
  %919 = vmatpush1.msra.mxu0 0.0
  %920 = vmatprep.subr.mxu0 0.0
  %921 = vmatpush1.msra.mxu0 0.0
  %922 = vmatprep.subr.mxu0 0.0
  %923 = vmatpush1.msra.mxu0 0.0
  %924 = vmatprep.subr.mxu0 0.0
  %925 = vmatpush1.msra.mxu0 0.0
  %926 = vmatprep.subr.mxu0 0.0
  %927 = vmatpush1.msra.mxu0 0.0
  %928 = vmatprep.subr.mxu0 0.0
  %929 = vmatpush1.msra.mxu0 0.0
  %930 = vmatprep.subr.mxu0 0.0
  %931 = vmatpush1.msra.mxu0 0.0
  %932 = vmatprep.subr.mxu0 0.0
  %933 = vmatpush1.msra.mxu0 0.0
  %934 = vmatprep.subr.mxu0 0.0
  %935 = vmatpush1.msra.mxu0 0.0
  %936 = vmatprep.subr.mxu0 0.0
  %937 = vmatpush1.msra.mxu0 0.0
  %938 = vmatprep.subr.mxu0 0.0
  %939 = vmatpush1.msra.mxu0 0.0
  %940 = vmatprep.mubr.f32.mxu0 0.0
  %v941 = vand.u32 %v686, 4294901760
  %942 = vmatmul.mubr.f32.gmra.mrb[0].mxu0 %v941
  %v943 = vpop.f32.mrb[0].mxu0
  %v944 = vadd.f32 %v793, %v943
  %v945 = vpop.f32.mrb[0].mxu0
  %946 = vdwg.mxu0
  %947 = vmatprep.subr.mxu0 0.0
  %v948 = vand.u32 %v687, 4294901760
  %v949 = vsub.f32 %v687, %v948
  %950 = vmatpush1.msra.mxu0 %v949
  %951 = vmatprep.subr.mxu0 0.0
  %v952 = vand.u32 %v688, 4294901760
  %v953 = vsub.f32 %v688, %v952
  %954 = vmatpush1.msra.mxu0 %v953
  %955 = vmatprep.subr.mxu0 0.0
  %v956 = vand.u32 %v689, 4294901760
  %v957 = vsub.f32 %v689, %v956
  %958 = vmatpush1.msra.mxu0 %v957
  %959 = vmatprep.subr.mxu0 0.0
  %v960 = vand.u32 %v690, 4294901760
  %v961 = vsub.f32 %v690, %v960
  %962 = vmatpush1.msra.mxu0 %v961
  %963 = vmatprep.subr.mxu0 0.0
  %v964 = vand.u32 %v691, 4294901760
  %v965 = vsub.f32 %v691, %v964
  %966 = vmatpush1.msra.mxu0 %v965
  %967 = vmatprep.subr.mxu0 0.0
  %v968 = vand.u32 %v692, 4294901760
  %v969 = vsub.f32 %v692, %v968
  %970 = vmatpush1.msra.mxu0 %v969
  %971 = vmatprep.subr.mxu0 0.0
  %v972 = vand.u32 %v693, 4294901760
  %v973 = vsub.f32 %v693, %v972
  %974 = vmatpush1.msra.mxu0 %v973
  %975 = vmatprep.subr.mxu0 0.0
  %v976 = vand.u32 %v694, 4294901760
  %v977 = vsub.f32 %v694, %v976
  %978 = vmatpush1.msra.mxu0 %v977
  %979 = vmatprep.subr.mxu0 0.0
  %v980 = vand.u32 %v695, 4294901760
  %v981 = vsub.f32 %v695, %v980
  %982 = vmatpush1.msra.mxu0 %v981
  %983 = vmatprep.subr.mxu0 0.0
  %v984 = vand.u32 %v696, 4294901760
  %v985 = vsub.f32 %v696, %v984
  %986 = vmatpush1.msra.mxu0 %v985
  %987 = vmatprep.subr.mxu0 0.0
  %v988 = vand.u32 %v697, 4294901760
  %v989 = vsub.f32 %v697, %v988
  %990 = vmatpush1.msra.mxu0 %v989
  %991 = vmatprep.subr.mxu0 0.0
  %v992 = vand.u32 %v698, 4294901760
  %v993 = vsub.f32 %v698, %v992
  %994 = vmatpush1.msra.mxu0 %v993
  %995 = vmatprep.subr.mxu0 0.0
  %v996 = vand.u32 %v699, 4294901760
  %v997 = vsub.f32 %v699, %v996
  %998 = vmatpush1.msra.mxu0 %v997
  %999 = vmatprep.subr.mxu0 0.0
  %v1000 = vand.u32 %v700, 4294901760
  %v1001 = vsub.f32 %v700, %v1000
  %1002 = vmatpush1.msra.mxu0 %v1001
  %1003 = vmatprep.subr.mxu0 0.0
  %v1004 = vand.u32 %v701, 4294901760
  %v1005 = vsub.f32 %v701, %v1004
  %1006 = vmatpush1.msra.mxu0 %v1005
  %1007 = vmatprep.subr.mxu0 0.0
  %v1008 = vand.u32 %v702, 4294901760
  %v1009 = vsub.f32 %v702, %v1008
  %1010 = vmatpush1.msra.mxu0 %v1009
  %1011 = vmatprep.subr.mxu0 0.0
  %1012 = vmatpush1.msra.mxu0 0.0
  %1013 = vmatprep.subr.mxu0 0.0
  %1014 = vmatpush1.msra.mxu0 0.0
  %1015 = vmatprep.subr.mxu0 0.0
  %1016 = vmatpush1.msra.mxu0 0.0
  %1017 = vmatprep.subr.mxu0 0.0
  %1018 = vmatpush1.msra.mxu0 0.0
  %1019 = vmatprep.subr.mxu0 0.0
  %1020 = vmatpush1.msra.mxu0 0.0
  %1021 = vmatprep.subr.mxu0 0.0
  %1022 = vmatpush1.msra.mxu0 0.0
  %1023 = vmatprep.subr.mxu0 0.0
  %1024 = vmatpush1.msra.mxu0 0.0
  %1025 = vmatprep.subr.mxu0 0.0
  %1026 = vmatpush1.msra.mxu0 0.0
  %1027 = vmatprep.subr.mxu0 0.0
  %1028 = vmatpush1.msra.mxu0 0.0
  %1029 = vmatprep.subr.mxu0 0.0
  %1030 = vmatpush1.msra.mxu0 0.0
  %1031 = vmatprep.subr.mxu0 0.0
  %1032 = vmatpush1.msra.mxu0 0.0
  %1033 = vmatprep.subr.mxu0 0.0
  %1034 = vmatpush1.msra.mxu0 0.0
  %1035 = vmatprep.subr.mxu0 0.0
  %1036 = vmatpush1.msra.mxu0 0.0
  %1037 = vmatprep.subr.mxu0 0.0
  %1038 = vmatpush1.msra.mxu0 0.0
  %1039 = vmatprep.subr.mxu0 0.0
  %1040 = vmatpush1.msra.mxu0 0.0
  %1041 = vmatprep.subr.mxu0 0.0
  %1042 = vmatpush1.msra.mxu0 0.0
  %1043 = vmatprep.mubr.f32.mxu0 0.0
  %v1044 = vand.u32 %v686, 4294901760
  %v1045 = vsub.f32 %v686, %v1044
  %1046 = vmatmul.mubr.f32.gmra.mrb[0].mxu0 %v1045
  %v1047 = vpop.f32.mrb[0].mxu0
  %v1048 = vadd.f32 %v944, %v1047
  %v1049 = vpop.f32.mrb[0].mxu0
  %1050 = vdwg.mxu0
  %1051 = vmatprep.subr.mxu0 0.0
  %v1052 = vand.u32 %v687, 4294901760
  %1053 = vmatpush1.msra.mxu0 %v1052
  %1054 = vmatprep.subr.mxu0 0.0
  %v1055 = vand.u32 %v688, 4294901760
  %1056 = vmatpush1.msra.mxu0 %v1055
  %1057 = vmatprep.subr.mxu0 0.0
  %v1058 = vand.u32 %v689, 4294901760
  %1059 = vmatpush1.msra.mxu0 %v1058
  %1060 = vmatprep.subr.mxu0 0.0
  %v1061 = vand.u32 %v690, 4294901760
  %1062 = vmatpush1.msra.mxu0 %v1061
  %1063 = vmatprep.subr.mxu0 0.0
  %v1064 = vand.u32 %v691, 4294901760
  %1065 = vmatpush1.msra.mxu0 %v1064
  %1066 = vmatprep.subr.mxu0 0.0
  %v1067 = vand.u32 %v692, 4294901760
  %1068 = vmatpush1.msra.mxu0 %v1067
  %1069 = vmatprep.subr.mxu0 0.0
  %v1070 = vand.u32 %v693, 4294901760
  %1071 = vmatpush1.msra.mxu0 %v1070
  %1072 = vmatprep.subr.mxu0 0.0
  %v1073 = vand.u32 %v694, 4294901760
  %1074 = vmatpush1.msra.mxu0 %v1073
  %1075 = vmatprep.subr.mxu0 0.0
  %v1076 = vand.u32 %v695, 4294901760
  %1077 = vmatpush1.msra.mxu0 %v1076
  %1078 = vmatprep.subr.mxu0 0.0
  %v1079 = vand.u32 %v696, 4294901760
  %1080 = vmatpush1.msra.mxu0 %v1079
  %1081 = vmatprep.subr.mxu0 0.0
  %v1082 = vand.u32 %v697, 4294901760
  %1083 = vmatpush1.msra.mxu0 %v1082
  %1084 = vmatprep.subr.mxu0 0.0
  %v1085 = vand.u32 %v698, 4294901760
  %1086 = vmatpush1.msra.mxu0 %v1085
  %1087 = vmatprep.subr.mxu0 0.0
  %v1088 = vand.u32 %v699, 4294901760
  %1089 = vmatpush1.msra.mxu0 %v1088
  %1090 = vmatprep.subr.mxu0 0.0
  %v1091 = vand.u32 %v700, 4294901760
  %1092 = vmatpush1.msra.mxu0 %v1091
  %1093 = vmatprep.subr.mxu0 0.0
  %v1094 = vand.u32 %v701, 4294901760
  %1095 = vmatpush1.msra.mxu0 %v1094
  %1096 = vmatprep.subr.mxu0 0.0
  %v1097 = vand.u32 %v702, 4294901760
  %1098 = vmatpush1.msra.mxu0 %v1097
  %1099 = vmatprep.subr.mxu0 0.0
  %1100 = vmatpush1.msra.mxu0 0.0
  %1101 = vmatprep.subr.mxu0 0.0
  %1102 = vmatpush1.msra.mxu0 0.0
  %1103 = vmatprep.subr.mxu0 0.0
  %1104 = vmatpush1.msra.mxu0 0.0
  %1105 = vmatprep.subr.mxu0 0.0
  %1106 = vmatpush1.msra.mxu0 0.0
  %1107 = vmatprep.subr.mxu0 0.0
  %1108 = vmatpush1.msra.mxu0 0.0
  %1109 = vmatprep.subr.mxu0 0.0
  %1110 = vmatpush1.msra.mxu0 0.0
  %1111 = vmatprep.subr.mxu0 0.0
  %1112 = vmatpush1.msra.mxu0 0.0
  %1113 = vmatprep.subr.mxu0 0.0
  %1114 = vmatpush1.msra.mxu0 0.0
  %1115 = vmatprep.subr.mxu0 0.0
  %1116 = vmatpush1.msra.mxu0 0.0
  %1117 = vmatprep.subr.mxu0 0.0
  %1118 = vmatpush1.msra.mxu0 0.0
  %1119 = vmatprep.subr.mxu0 0.0
  %1120 = vmatpush1.msra.mxu0 0.0
  %1121 = vmatprep.subr.mxu0 0.0
  %1122 = vmatpush1.msra.mxu0 0.0
  %1123 = vmatprep.subr.mxu0 0.0
  %1124 = vmatpush1.msra.mxu0 0.0
  %1125 = vmatprep.subr.mxu0 0.0
  %1126 = vmatpush1.msra.mxu0 0.0
  %1127 = vmatprep.subr.mxu0 0.0
  %1128 = vmatpush1.msra.mxu0 0.0
  %1129 = vmatprep.subr.mxu0 0.0
  %1130 = vmatpush1.msra.mxu0 0.0
  %1131 = vmatprep.mubr.f32.mxu0 0.0
  %v1132 = vand.u32 %v686, 4294901760
  %v1133 = vsub.f32 %v686, %v1132
  %v1134 = vand.u32 %v1133, 4294901760
  %1135 = vmatmul.mubr.f32.gmra.mrb[0].mxu0 %v1134
  %v1136 = vpop.f32.mrb[0].mxu0
  %v1137 = vadd.f32 %v1048, %v1136
  %v1138 = vpop.f32.mrb[0].mxu0
  %1139 = vdwg.mxu0
  %1140 = vmatprep.subr.mxu0 0.0
  %v1141 = vand.u32 %v687, 4294901760
  %v1142 = vsub.f32 %v687, %v1141
  %v1143 = vand.u32 %v1142, 4294901760
  %1144 = vmatpush1.msra.mxu0 %v1143
  %1145 = vmatprep.subr.mxu0 0.0
  %v1146 = vand.u32 %v688, 4294901760
  %v1147 = vsub.f32 %v688, %v1146
  %v1148 = vand.u32 %v1147, 4294901760
  %1149 = vmatpush1.msra.mxu0 %v1148
  %1150 = vmatprep.subr.mxu0 0.0
  %v1151 = vand.u32 %v689, 4294901760
  %v1152 = vsub.f32 %v689, %v1151
  %v1153 = vand.u32 %v1152, 4294901760
  %1154 = vmatpush1.msra.mxu0 %v1153
  %1155 = vmatprep.subr.mxu0 0.0
  %v1156 = vand.u32 %v690, 4294901760
  %v1157 = vsub.f32 %v690, %v1156
  %v1158 = vand.u32 %v1157, 4294901760
  %1159 = vmatpush1.msra.mxu0 %v1158
  %1160 = vmatprep.subr.mxu0 0.0
  %v1161 = vand.u32 %v691, 4294901760
  %v1162 = vsub.f32 %v691, %v1161
  %v1163 = vand.u32 %v1162, 4294901760
  %1164 = vmatpush1.msra.mxu0 %v1163
  %1165 = vmatprep.subr.mxu0 0.0
  %v1166 = vand.u32 %v692, 4294901760
  %v1167 = vsub.f32 %v692, %v1166
  %v1168 = vand.u32 %v1167, 4294901760
  %1169 = vmatpush1.msra.mxu0 %v1168
  %1170 = vmatprep.subr.mxu0 0.0
  %v1171 = vand.u32 %v693, 4294901760
  %v1172 = vsub.f32 %v693, %v1171
  %v1173 = vand.u32 %v1172, 4294901760
  %1174 = vmatpush1.msra.mxu0 %v1173
  %1175 = vmatprep.subr.mxu0 0.0
  %v1176 = vand.u32 %v694, 4294901760
  %v1177 = vsub.f32 %v694, %v1176
  %v1178 = vand.u32 %v1177, 4294901760
  %1179 = vmatpush1.msra.mxu0 %v1178
  %1180 = vmatprep.subr.mxu0 0.0
  %v1181 = vand.u32 %v695, 4294901760
  %v1182 = vsub.f32 %v695, %v1181
  %v1183 = vand.u32 %v1182, 4294901760
  %1184 = vmatpush1.msra.mxu0 %v1183
  %1185 = vmatprep.subr.mxu0 0.0
  %v1186 = vand.u32 %v696, 4294901760
  %v1187 = vsub.f32 %v696, %v1186
  %v1188 = vand.u32 %v1187, 4294901760
  %1189 = vmatpush1.msra.mxu0 %v1188
  %1190 = vmatprep.subr.mxu0 0.0
  %v1191 = vand.u32 %v697, 4294901760
  %v1192 = vsub.f32 %v697, %v1191
  %v1193 = vand.u32 %v1192, 4294901760
  %1194 = vmatpush1.msra.mxu0 %v1193
  %1195 = vmatprep.subr.mxu0 0.0
  %v1196 = vand.u32 %v698, 4294901760
  %v1197 = vsub.f32 %v698, %v1196
  %v1198 = vand.u32 %v1197, 4294901760
  %1199 = vmatpush1.msra.mxu0 %v1198
  %1200 = vmatprep.subr.mxu0 0.0
  %v1201 = vand.u32 %v699, 4294901760
  %v1202 = vsub.f32 %v699, %v1201
  %v1203 = vand.u32 %v1202, 4294901760
  %1204 = vmatpush1.msra.mxu0 %v1203
  %1205 = vmatprep.subr.mxu0 0.0
  %v1206 = vand.u32 %v700, 4294901760
  %v1207 = vsub.f32 %v700, %v1206
  %v1208 = vand.u32 %v1207, 4294901760
  %1209 = vmatpush1.msra.mxu0 %v1208
  %1210 = vmatprep.subr.mxu0 0.0
  %v1211 = vand.u32 %v701, 4294901760
  %v1212 = vsub.f32 %v701, %v1211
  %v1213 = vand.u32 %v1212, 4294901760
  %1214 = vmatpush1.msra.mxu0 %v1213
  %1215 = vmatprep.subr.mxu0 0.0
  %v1216 = vand.u32 %v702, 4294901760
  %v1217 = vsub.f32 %v702, %v1216
  %v1218 = vand.u32 %v1217, 4294901760
  %1219 = vmatpush1.msra.mxu0 %v1218
  %1220 = vmatprep.subr.mxu0 0.0
  %1221 = vmatpush1.msra.mxu0 0.0
  %1222 = vmatprep.subr.mxu0 0.0
  %1223 = vmatpush1.msra.mxu0 0.0
  %1224 = vmatprep.subr.mxu0 0.0
  %1225 = vmatpush1.msra.mxu0 0.0
  %1226 = vmatprep.subr.mxu0 0.0
  %1227 = vmatpush1.msra.mxu0 0.0
  %1228 = vmatprep.subr.mxu0 0.0
  %1229 = vmatpush1.msra.mxu0 0.0
  %1230 = vmatprep.subr.mxu0 0.0
  %1231 = vmatpush1.msra.mxu0 0.0
  %1232 = vmatprep.subr.mxu0 0.0
  %1233 = vmatpush1.msra.mxu0 0.0
  %1234 = vmatprep.subr.mxu0 0.0
  %1235 = vmatpush1.msra.mxu0 0.0
  %1236 = vmatprep.subr.mxu0 0.0
  %1237 = vmatpush1.msra.mxu0 0.0
  %1238 = vmatprep.subr.mxu0 0.0
  %1239 = vmatpush1.msra.mxu0 0.0
  %1240 = vmatprep.subr.mxu0 0.0
  %1241 = vmatpush1.msra.mxu0 0.0
  %1242 = vmatprep.subr.mxu0 0.0
  %1243 = vmatpush1.msra.mxu0 0.0
  %1244 = vmatprep.subr.mxu0 0.0
  %1245 = vmatpush1.msra.mxu0 0.0
  %1246 = vmatprep.subr.mxu0 0.0
  %1247 = vmatpush1.msra.mxu0 0.0
  %1248 = vmatprep.subr.mxu0 0.0
  %1249 = vmatpush1.msra.mxu0 0.0
  %1250 = vmatprep.subr.mxu0 0.0
  %1251 = vmatpush1.msra.mxu0 0.0
  %1252 = vmatprep.mubr.f32.mxu0 0.0
  %v1253 = vand.u32 %v686, 4294901760
  %1254 = vmatmul.mubr.f32.gmra.mrb[0].mxu0 %v1253
  %v1255 = vpop.f32.mrb[0].mxu0
  %v1256 = vadd.f32 %v1137, %v1255
  %v1257 = vpop.f32.mrb[0].mxu0
  %1258 = vdwg.mxu0
  %1259 = vmatprep.subr.mxu0 0.0
  %v1260 = vand.u32 %v687, 4294901760
  %1261 = vmatpush1.msra.mxu0 %v1260
  %1262 = vmatprep.subr.mxu0 0.0
  %v1263 = vand.u32 %v688, 4294901760
  %1264 = vmatpush1.msra.mxu0 %v1263
  %1265 = vmatprep.subr.mxu0 0.0
  %v1266 = vand.u32 %v689, 4294901760
  %1267 = vmatpush1.msra.mxu0 %v1266
  %1268 = vmatprep.subr.mxu0 0.0
  %v1269 = vand.u32 %v690, 4294901760
  %1270 = vmatpush1.msra.mxu0 %v1269
  %1271 = vmatprep.subr.mxu0 0.0
  %v1272 = vand.u32 %v691, 4294901760
  %1273 = vmatpush1.msra.mxu0 %v1272
  %1274 = vmatprep.subr.mxu0 0.0
  %v1275 = vand.u32 %v692, 4294901760
  %1276 = vmatpush1.msra.mxu0 %v1275
  %1277 = vmatprep.subr.mxu0 0.0
  %v1278 = vand.u32 %v693, 4294901760
  %1279 = vmatpush1.msra.mxu0 %v1278
  %1280 = vmatprep.subr.mxu0 0.0
  %v1281 = vand.u32 %v694, 4294901760
  %1282 = vmatpush1.msra.mxu0 %v1281
  %1283 = vmatprep.subr.mxu0 0.0
  %v1284 = vand.u32 %v695, 4294901760
  %1285 = vmatpush1.msra.mxu0 %v1284
  %1286 = vmatprep.subr.mxu0 0.0
  %v1287 = vand.u32 %v696, 4294901760
  %1288 = vmatpush1.msra.mxu0 %v1287
  %1289 = vmatprep.subr.mxu0 0.0
  %v1290 = vand.u32 %v697, 4294901760
  %1291 = vmatpush1.msra.mxu0 %v1290
  %1292 = vmatprep.subr.mxu0 0.0
  %v1293 = vand.u32 %v698, 4294901760
  %1294 = vmatpush1.msra.mxu0 %v1293
  %1295 = vmatprep.subr.mxu0 0.0
  %v1296 = vand.u32 %v699, 4294901760
  %1297 = vmatpush1.msra.mxu0 %v1296
  %1298 = vmatprep.subr.mxu0 0.0
  %v1299 = vand.u32 %v700, 4294901760
  %1300 = vmatpush1.msra.mxu0 %v1299
  %1301 = vmatprep.subr.mxu0 0.0
  %v1302 = vand.u32 %v701, 4294901760
  %1303 = vmatpush1.msra.mxu0 %v1302
  %1304 = vmatprep.subr.mxu0 0.0
  %v1305 = vand.u32 %v702, 4294901760
  %1306 = vmatpush1.msra.mxu0 %v1305
  %1307 = vmatprep.subr.mxu0 0.0
  %1308 = vmatpush1.msra.mxu0 0.0
  %1309 = vmatprep.subr.mxu0 0.0
  %1310 = vmatpush1.msra.mxu0 0.0
  %1311 = vmatprep.subr.mxu0 0.0
  %1312 = vmatpush1.msra.mxu0 0.0
  %1313 = vmatprep.subr.mxu0 0.0
  %1314 = vmatpush1.msra.mxu0 0.0
  %1315 = vmatprep.subr.mxu0 0.0
  %1316 = vmatpush1.msra.mxu0 0.0
  %1317 = vmatprep.subr.mxu0 0.0
  %1318 = vmatpush1.msra.mxu0 0.0
  %1319 = vmatprep.subr.mxu0 0.0
  %1320 = vmatpush1.msra.mxu0 0.0
  %1321 = vmatprep.subr.mxu0 0.0
  %1322 = vmatpush1.msra.mxu0 0.0
  %1323 = vmatprep.subr.mxu0 0.0
  %1324 = vmatpush1.msra.mxu0 0.0
  %1325 = vmatprep.subr.mxu0 0.0
  %1326 = vmatpush1.msra.mxu0 0.0
  %1327 = vmatprep.subr.mxu0 0.0
  %1328 = vmatpush1.msra.mxu0 0.0
  %1329 = vmatprep.subr.mxu0 0.0
  %1330 = vmatpush1.msra.mxu0 0.0
  %1331 = vmatprep.subr.mxu0 0.0
  %1332 = vmatpush1.msra.mxu0 0.0
  %1333 = vmatprep.subr.mxu0 0.0
  %1334 = vmatpush1.msra.mxu0 0.0
  %1335 = vmatprep.subr.mxu0 0.0
  %1336 = vmatpush1.msra.mxu0 0.0
  %1337 = vmatprep.subr.mxu0 0.0
  %1338 = vmatpush1.msra.mxu0 0.0
  %1339 = vmatprep.mubr.f32.mxu0 0.0
  %v1340 = vand.u32 %v686, 4294901760
  %1341 = vmatmul.mubr.f32.gmra.mrb[0].mxu0 %v1340
  %v1342 = vpop.f32.mrb[0].mxu0
  %v1343 = vadd.f32 %v1256, %v1342
  %v1344 = vpop.f32.mrb[0].mxu0
  %1345 = vdwg.mxu0
  %vm1346 = vcmask 261120
  %1347 = vst.msk [vmem:[%s5] sm:$0xff] %vm1346, %v1343
  // Predicated region
  $region22: #{mlp_forward.1} parent=0 // pred_check
    _
  $region23: #{mlp_forward.1} parent=0 // pred_check_branch
    %1349 = sbr.rel (0) target = $region25
  $region24: #{mlp_forward.1} parent=0 // pred_region
    _
  $region25: #{mlp_forward.1} parent=0 // pred_fallthru
    _
  // Predicated region
  $region26: #{mlp_forward.1} parent=0 // pred_check
    _
  $region27: #{mlp_forward.1} parent=0 // pred_check_branch
    %1351 = sbr.rel (0) target = $region29
  $region28: #{mlp_forward.1} parent=0 // pred_region
    _
  $region29: #{mlp_forward.1} parent=0 // pred_fallthru
    _

</llo_original>
